<compile_context>
chip_gen: v7x
topology: tpu7x:2x2x1
jax: 0.10.0
libtpu: 0.0.40
codegen_flags: <defaults>
</compile_context>

<pallas_src>
import functools

import numpy as np

import jax
import jax.numpy as jnp
from jax.experimental import pallas as pl
from jax.experimental.pallas import tpu as pltpu

LANE = 128


def _ru(x, m):
    return (x + m - 1) // m * m


# ----------------------------------------------------------------------------
# One-time param prep (host / numpy, NOT in the hot path):
#   fold convs + adjacent linears into dense matrices, split the torch.cat()s,
#   pad every lane dim to 128, pack into two slabs.
# ----------------------------------------------------------------------------
def _conv2d_as_matrix(w, h_in, w_in, stride, pad):
    """torch nn.Conv2d weight (Cout,Cin,KH,KW) -> M with
    out.reshape(B,-1) == x.reshape(B,-1) @ M (channel-major NCHW flatten)."""
    w = np.asarray(w, np.float32)
    cout, cin, kh, kw = w.shape
    oh = (h_in + 2 * pad - kh) // stride + 1
    ow = (w_in + 2 * pad - kw) // stride + 1
    ci, iy, ix, co, oy, ox = np.meshgrid(
        np.arange(cin), np.arange(h_in), np.arange(w_in),
        np.arange(cout), np.arange(oh), np.arange(ow), indexing="ij")
    ky = iy - stride * oy + pad
    kx = ix - stride * ox + pad
    valid = (ky >= 0) & (ky < kh) & (kx >= 0) & (kx < kw)
    vals = w[co, ci, np.clip(ky, 0, kh - 1), np.clip(kx, 0, kw - 1)]
    m = np.where(valid, vals, 0.0).astype(np.float32)
    return m.reshape(cin * h_in * w_in, cout * oh * ow), (oh, ow)


def _conv_transpose2d_as_matrix(w, h_in, w_in, stride, pad):
    """torch nn.ConvTranspose2d weight (Cin,Cout,KH,KW) -> M with
    out.reshape(B,-1) == x.reshape(B,-1) @ M (channel-major NCHW flatten)."""
    w = np.asarray(w, np.float32)
    cin, cout, kh, kw = w.shape
    oh = (h_in - 1) * stride - 2 * pad + kh
    ow = (w_in - 1) * stride - 2 * pad + kw
    ci, iy, ix, co, oy, ox = np.meshgrid(
        np.arange(cin), np.arange(h_in), np.arange(w_in),
        np.arange(cout), np.arange(oh), np.arange(ow), indexing="ij")
    ky = oy - stride * iy + pad
    kx = ox - stride * ix + pad
    valid = (ky >= 0) & (ky < kh) & (kx >= 0) & (kx < kw)
    vals = w[ci, co, np.clip(ky, 0, kh - 1), np.clip(kx, 0, kw - 1)]
    m = np.where(valid, vals, 0.0).astype(np.float32)
    return m.reshape(cin * h_in * w_in, cout * oh * ow), (oh, ow)


def _pad2d(m, rows, cols):
    out = np.zeros((rows, cols), np.float32)
    out[:m.shape[0], :m.shape[1]] = m
    return out


def prepare_params(p, *, image_hw, latent_dim, embedding_dim):
    H, W = image_hw
    E, Lt = int(embedding_dim), int(latent_dim)
    f32 = np.float32

    # Convs / transposed convs folded to dense matrices (channel-major flatten).
    m_c1, (oh1, ow1) = _conv2d_as_matrix(p["conv1_w"], H, W, 2, 1)
    m_c2, (oh2, ow2) = _conv2d_as_matrix(p["conv2_w"], oh1, ow1, 2, 1)
    assert oh2 == 1 and ow2 == 1, "Flatten -> Linear(hidden, emb) needs 1x1 conv2 output"
    m_u1, (uh1, uw1) = _conv_transpose2d_as_matrix(p["upconv1_w"], 1, 1, 2, 1)
    m_u2, (uh2, uw2) = _conv_transpose2d_as_matrix(p["upconv2_w"], uh1, uw1, 2, 1)
    assert (uh2, uw2) == (H, W), "decoder must reconstruct the input spatial size"

    img_k = m_c1.shape[0]          # Cin*H*W
    hid4 = m_c1.shape[1]           # hidden * oh1 * ow1
    rec_n = m_u2.shape[1]          # Cin*H*W

    img_kp = _ru(img_k, LANE)
    hid4p = _ru(hid4, LANE)
    Ep = _ru(E, LANE)
    Lp = _ru(Lt, LANE)
    rec_np = _ru(rec_n, LANE)

    w_text = np.asarray(p["text_fc_w"], f32).T                        # (768, E)
    b_text = np.asarray(p["text_fc_b"], f32)[None]                    # (1, E)

    b_c1 = np.repeat(np.asarray(p["conv1_b"], f32), oh1 * ow1)[None]  # (1, hid4)

    # conv2 -> enc fc1 fold (no nonlinearity between them)
    enc_w_t = np.asarray(p["enc_fc1_w"], f32).T                       # (hidden, E)
    m_c2e = m_c2 @ enc_w_t                                            # (hid4, E)
    b_c2e = (np.asarray(p["conv2_b"], f32) @ enc_w_t
             + np.asarray(p["enc_fc1_b"], f32))[None]                 # (1, E)

    # fc_mu / fc_logvar: cat([h,y]) split into h/y parts, mu|logvar fused on N
    w_mu = np.asarray(p["fc_mu_w"], f32)                              # (L, 2E)
    w_lv = np.asarray(p["fc_logvar_w"], f32)
    m_ml_h = np.concatenate([_pad2d(w_mu[:, :E].T, E, Lp),
                             _pad2d(w_lv[:, :E].T, E, Lp)], axis=1)   # (E, 2Lp)
    m_ml_y = np.concatenate([_pad2d(w_mu[:, E:].T, E, Lp),
                             _pad2d(w_lv[:, E:].T, E, Lp)], axis=1)   # (E, 2Lp)
    b_ml = np.concatenate([_pad2d(np.asarray(p["fc_mu_b"], f32)[None], 1, Lp),
                           _pad2d(np.asarray(p["fc_logvar_b"], f32)[None], 1, Lp)],
                          axis=1)                                     # (1, 2Lp)

    # decoder fc1 -> upconv1 fold (Unflatten to (hidden,1,1); no nonlinearity)
    dec_w = np.asarray(p["dec_fc1_w"], f32)                           # (hidden, L+E)
    m_z_up = dec_w[:, :Lt].T @ m_u1                                   # (L, hid4)
    m_y_up = dec_w[:, Lt:].T @ m_u1                                   # (E, hid4)
    b_up = (np.asarray(p["dec_fc1_b"], f32) @ m_u1
            + np.repeat(np.asarray(p["upconv1_b"], f32), uh1 * uw1))[None]  # (1, hid4)
    b_u2 = np.repeat(np.asarray(p["upconv2_b"], f32), uh2 * uw2)[None]      # (1, rec_n)

    # ---- pack all weights into ONE bf16 slab (K/N padded to 128) ----
    w_list = [                      # (name, matrix, K_padded, N_padded)
        ("text", w_text, 768, Ep),
        ("conv1", m_c1, img_kp, hid4p),
        ("c2e", m_c2e, hid4p, Ep),
        ("ml_h", m_ml_h, Ep, 2 * Lp),
        ("ml_y", m_ml_y, Ep, 2 * Lp),
        ("z_up", m_z_up, Lp, hid4p),
        ("y_up", m_y_up, Ep, hid4p),
        ("up2", m_u2, hid4p, rec_np),
    ]
    slab_w = max(n for _, _, _, n in w_list)
    rows = sum(k for _, _, k, _ in w_list)
    w_slab = np.zeros((rows, slab_w), f32)
    wlay = {}
    r = 0
    for name, m, kp, npad in w_list:
        w_slab[r:r + m.shape[0], :m.shape[1]] = m
        wlay[name] = (r, kp, npad)
        r += kp

    # ---- pack all biases into ONE f32 lane-concatenated slab ----
    b_list = [
        ("text", b_text, Ep), ("conv1", b_c1, hid4p), ("c2e", b_c2e, Ep),
        ("ml", b_ml, 2 * Lp), ("up", b_up, hid4p), ("up2", b_u2, rec_np),
    ]
    b_total = sum(n for _, _, n in b_list)
    b_slab = np.zeros((1, b_total), f32)
    blay = {}
    c = 0
    for name, b, npad in b_list:
        b_slab[0, c:c + b.shape[1]] = b[0]
        blay[name] = (c, npad)
        c += npad

    slabs = {
        "w_slab": jnp.asarray(w_slab, dtype=jnp.bfloat16),
        "b_slab": jnp.asarray(b_slab, dtype=jnp.float32),
    }
    layout = {                               # Python ints only (static at trace)
        "text": (0, 768),
        "img": (768, img_kp),
        "eps": (768 + img_kp, Lp),
        "x_width": 768 + img_kp + Lp,
        "w": wlay,
        "b": blay,
        "Lp": Lp, "rec_n": rec_n, "rec_np": rec_np, "img_k": img_k,
        "out_width": rec_np + 2 * Lp,
    }
    return slabs, layout


# ----------------------------------------------------------------------------
# The single fused Pallas kernel (weights VMEM-resident, lane-dense I/O)
# ----------------------------------------------------------------------------
def _make_kernel(lay):
    tx0, txk = lay["text"]
    ix0, ixk = lay["img"]
    ex0, exk = lay["eps"]
    wl, bl = lay["w"], lay["b"]
    Lp, rec_np = lay["Lp"], lay["rec_np"]

    def kernel(x_ref, w_ref, b_ref, o_ref):
        f32 = jnp.float32
        bf16 = jnp.bfloat16

        def dot(a, name):                      # bf16 MXU matmul, f32 accumulate
            r, k, n = wl[name]
            return jnp.dot(a.astype(bf16), w_ref[r:r + k, 0:n],
                           preferred_element_type=f32)

        def bias(name):                        # (1, n) f32, lane-aligned
            c, n = bl[name]
            return b_ref[:, c:c + n]

        text = x_ref[:, tx0:tx0 + txk]
        img = x_ref[:, ix0:ix0 + ixk]
        eps = x_ref[:, ex0:ex0 + exk].astype(f32)

        # TextEncoder.fc (post-BERT pooled output)
        y = dot(text, "text") + bias("text")                           # (TM, Ep)
        # Encoder: conv1 + ReLU, then [conv2 -> Flatten -> fc1] folded
        h = jnp.maximum(dot(img, "conv1") + bias("conv1"), 0.0)        # (TM, hid4p)
        h = dot(h, "c2e") + bias("c2e")                                # (TM, Ep)
        # fc_mu | fc_logvar fused along N; cat([h, y]) via split weights
        ml = dot(h, "ml_h") + dot(y, "ml_y") + bias("ml")              # (TM, 2Lp)
        mu = ml[:, 0:Lp]
        lv = ml[:, Lp:2 * Lp]
        # reparameterize (f32 elementwise)
        z = mu + jnp.exp(0.5 * lv) * eps                               # (TM, Lp)
        # Decoder: [fc1 (cat([z,y]) split) -> Unflatten -> upconv1] folded, ReLU
        d = jnp.maximum(dot(z, "z_up") + dot(y, "y_up") + bias("up"), 0.0)
        # upconv2 + Sigmoid
        rec = jax.nn.sigmoid(dot(d, "up2") + bias("up2"))              # (TM, rec_np)

        # single lane-dense packed output: [recon | mu | logvar]
        o_ref[:, 0:rec_np] = rec
        o_ref[:, rec_np:rec_np + Lp] = mu
        o_ref[:, rec_np + Lp:rec_np + 2 * Lp] = lv

    return kernel


def textcvae_forward(slabs, pooled_text, image, eps, *, layout):
    """Fused TextCVAE forward.  Returns (x_recon, mu, logvar)."""
    lay = layout
    B, C, H, W = image.shape
    Lt = eps.shape[1]
    x_width, out_w = lay["x_width"], lay["out_width"]
    rec_n, rec_np, Lp = lay["rec_n"], lay["rec_np"], lay["Lp"]

    # Batch tile: multiple of 16 (bf16 sublane packing); weights stay resident
    # across the ("parallel",) M grid (block index constant -> no re-DMA).
    TM = min(_ru(max(B, 1), 16), 512)
    Bp = _ru(B, TM)

    def pad_block(a, cols):
        a = a.astype(jnp.bfloat16)
        return jnp.pad(a, ((0, Bp - a.shape[0]), (0, cols - a.shape[1])))

    # One lane-aligned packed input slab: [text(768) | img(->128k) | eps(->Lp)]
    x = jnp.concatenate([
        pad_block(pooled_text, lay["text"][1]),
        pad_block(image.reshape(B, -1), lay["img"][1]),
        pad_block(eps, lay["eps"][1]),
    ], axis=1)

    out = pl.pallas_call(
        _make_kernel(lay),
        out_shape=jax.ShapeDtypeStruct((Bp, out_w), jnp.float32),
        grid=(Bp // TM,),
        in_specs=[
            pl.BlockSpec((TM, x_width), lambda i: (i, 0)),
            pl.BlockSpec(slabs["w_slab"].shape, lambda i: (0, 0)),
            pl.BlockSpec(slabs["b_slab"].shape, lambda i: (0, 0)),
        ],
        out_specs=pl.BlockSpec((TM, out_w), lambda i: (i, 0)),
        compiler_params=pltpu.CompilerParams(
            dimension_semantics=("parallel",)),
    )(x, slabs["w_slab"], slabs["b_slab"])

    x_recon = out[:B, 0:rec_n].reshape(B, C, H, W)
    mu = out[:B, rec_np:rec_np + Lt]
    logvar = out[:B, rec_np + Lp:rec_np + Lp + Lt]
    return x_recon, mu, logvar


# ----------------------------------------------------------------------------
# Deterministic parameter init (torch layouts, as in the reference module)
# ----------------------------------------------------------------------------
def init_params(key, in_dim, hidden_dim, latent_dim, embedding_dim):
    shapes = {
        "text_fc_w": (embedding_dim, 768), "text_fc_b": (embedding_dim,),
        "conv1_w": (hidden_dim, in_dim, 4, 4), "conv1_b": (hidden_dim,),
        "conv2_w": (hidden_dim, hidden_dim, 4, 4), "conv2_b": (hidden_dim,),
        "enc_fc1_w": (embedding_dim, hidden_dim), "enc_fc1_b": (embedding_dim,),
        "fc_mu_w": (latent_dim, 2 * embedding_dim), "fc_mu_b": (latent_dim,),
        "fc_logvar_w": (latent_dim, 2 * embedding_dim), "fc_logvar_b": (latent_dim,),
        "dec_fc1_w": (hidden_dim, latent_dim + embedding_dim), "dec_fc1_b": (hidden_dim,),
        "upconv1_w": (hidden_dim, hidden_dim, 4, 4), "upconv1_b": (hidden_dim,),
        "upconv2_w": (hidden_dim, in_dim, 4, 4), "upconv2_b": (in_dim,),
    }
    params = {}
    keys = jax.random.split(key, len(shapes))
    for k_rng, (name, shp) in zip(keys, sorted(shapes.items())):
        params[name] = 0.05 * jax.random.normal(k_rng, shp, dtype=jnp.float32)
    return params


# ----------------------------------------------------------------------------
# Plain-JAX reference of the PyTorch module (correctness check only)
# ----------------------------------------------------------------------------
def _ref_conv2d(x, w, b, stride, pad):
    bsz, _, h, wd = x.shape
    cout, _, kh, kw = w.shape
    oh = (h + 2 * pad - kh) // stride + 1
    ow = (wd + 2 * pad - kw) // stride + 1
    xp = jnp.pad(x, ((0, 0), (0, 0), (pad, pad), (pad, pad)))
    out = jnp.zeros((bsz, cout, oh, ow), jnp.float32)
    for oy in range(oh):
        for ox in range(ow):
            patch = xp[:, :, oy * stride:oy * stride + kh, ox * stride:ox * stride + kw]
            v = jnp.einsum("bchw,ochw->bo", patch, w,
                           precision=jax.lax.Precision.HIGHEST)
            out = out.at[:, :, oy, ox].set(v + b)
    return out


def _ref_conv_transpose2d(x, w, b, stride, pad):
    bsz, _, h, wd = x.shape
    _, cout, kh, kw = w.shape
    oh = (h - 1) * stride - 2 * pad + kh
    ow = (wd - 1) * stride - 2 * pad + kw
    full = jnp.zeros((bsz, cout, oh + 2 * pad, ow + 2 * pad), jnp.float32)
    for iy in range(h):
        for ix in range(wd):
            v = jnp.einsum("bc,cokl->bokl", x[:, :, iy, ix], w,
                           precision=jax.lax.Precision.HIGHEST)
            full = full.at[:, :, iy * stride:iy * stride + kh,
                           ix * stride:ix * stride + kw].add(v)
    return full[:, :, pad:pad + oh, pad:pad + ow] + b.reshape(1, -1, 1, 1)


def _reference_forward(p, pooled_text, image, eps):
    hp = jax.lax.Precision.HIGHEST
    lin = lambda x, w, b: jnp.dot(x, w.T, precision=hp) + b
    y = lin(pooled_text, p["text_fc_w"], p["text_fc_b"])
    h = jax.nn.relu(_ref_conv2d(image, p["conv1_w"], p["conv1_b"], 2, 1))
    h = _ref_conv2d(h, p["conv2_w"], p["conv2_b"], 2, 1)
    h = h.reshape(h.shape[0], -1)
    h = lin(h, p["enc_fc1_w"], p["enc_fc1_b"])
    hy = jnp.concatenate([h, y], axis=-1)
    mu = lin(hy, p["fc_mu_w"], p["fc_mu_b"])
    lv = lin(hy, p["fc_logvar_w"], p["fc_logvar_b"])
    z = mu + jnp.exp(0.5 * lv) * eps
    zy = jnp.concatenate([z, y], axis=-1)
    d = lin(zy, p["dec_fc1_w"], p["dec_fc1_b"])
    d = d.reshape(d.shape[0], -1, 1, 1)
    d = jax.nn.relu(_ref_conv_transpose2d(d, p["upconv1_w"], p["upconv1_b"], 2, 1))
    xr = jax.nn.sigmoid(_ref_conv_transpose2d(d, p["upconv2_w"], p["upconv2_b"], 2, 1))
    return xr, mu, lv


if __name__ == "__main__":
    B, in_dim, hidden_dim, latent_dim, embedding_dim = 2, 3, 32, 16, 32
    H = W = 4   # two stride-2 k=4 p=1 convs -> 1x1, matching nn.Linear(hidden, emb)

    root = jax.random.PRNGKey(0)
    k_params, k_img, k_txt, k_eps = jax.random.split(root, 4)

    raw_params = init_params(k_params, in_dim, hidden_dim, latent_dim, embedding_dim)
    image = jax.random.uniform(k_img, (B, in_dim, H, W), dtype=jnp.float32)
    pooled_text = jax.random.normal(k_txt, (B, 768), dtype=jnp.float32)
    eps = jax.random.normal(k_eps, (B, latent_dim), dtype=jnp.float32)

    # One-time, out of the hot path: fold + pad + pack everything into 2 slabs.
    slabs, layout = prepare_params(raw_params, image_hw=(H, W),
                                   latent_dim=latent_dim,
                                   embedding_dim=embedding_dim)

    fwd = jax.jit(functools.partial(textcvae_forward, layout=layout))
    x_recon, mu, logvar = fwd(slabs, pooled_text, image, eps)
    jax.block_until_ready((x_recon, mu, logvar))

    assert x_recon.shape == (B, in_dim, H, W)
    assert mu.shape == (B, latent_dim)
    assert logvar.shape == (B, latent_dim)
    assert bool(jnp.all((x_recon >= 0.0) & (x_recon <= 1.0)))

    # Numerical check against a straightforward (non-Pallas, f32) reference.
    xr_ref, mu_ref, lv_ref = _reference_forward(raw_params, pooled_text, image, eps)
    err = max(float(jnp.max(jnp.abs(x_recon - xr_ref))),
              float(jnp.max(jnp.abs(mu - mu_ref))),
              float(jnp.max(jnp.abs(logvar - lv_ref))))
    assert err < 5e-2, f"mismatch vs reference: {err}"

    print("KERNEL_OK")
</pallas_src>

<mosaic_0001>
module attributes {stable_mosaic.version = 11 : i64} {
  func.func @kernel(%arg0: i32, %arg1: memref<16x1024xbf16, #tpu.memory_space<vmem>>, %arg2: memref<1664x256xbf16, #tpu.memory_space<vmem>>, %arg3: memref<1x896xf32, #tpu.memory_space<vmem>>, %arg4: memref<16x384xf32, #tpu.memory_space<vmem>>) attributes {dimension_semantics = [#tpu.dimension_semantics<parallel>], iteration_bounds = array<i64: 1>, scalar_prefetch = 0 : i64, scratch_operands = 0 : i64, tpu.core_type = #tpu.core_type<tc>, window_params = [{transform_indices = @transform_0, window_bounds = array<i64: 16, 1024>}, {pipeline_mode = #tpu.pipeline_mode<synchronous>, transform_indices = @transform_1, window_bounds = array<i64: 1664, 256>}, {pipeline_mode = #tpu.pipeline_mode<synchronous>, transform_indices = @transform_2, window_bounds = array<i64: 1, 896>}, {transform_indices = @transform_3, window_bounds = array<i64: 16, 384>}]} {
    %c0 = arith.constant 0 : index
    %c0_0 = arith.constant 0 : index
    %0 = vector.load %arg1[%c0, %c0_0] : memref<16x1024xbf16, #tpu.memory_space<vmem>>, vector<16x768xbf16>
    %c0_1 = arith.constant 0 : index
    %c768 = arith.constant 768 : index
    %1 = vector.load %arg1[%c0_1, %c768] : memref<16x1024xbf16, #tpu.memory_space<vmem>>, vector<16x128xbf16>
    %c0_2 = arith.constant 0 : index
    %c896 = arith.constant 896 : index
    %2 = vector.load %arg1[%c0_2, %c896] : memref<16x1024xbf16, #tpu.memory_space<vmem>>, vector<16x128xbf16>
    %3 = arith.extf %2 : vector<16x128xbf16> to vector<16x128xf32>
    %c0_3 = arith.constant 0 : index
    %c0_4 = arith.constant 0 : index
    %4 = vector.load %arg2[%c0_3, %c0_4] : memref<1664x256xbf16, #tpu.memory_space<vmem>>, vector<768x128xbf16>
    %cst = arith.constant dense<0.000000e+00> : vector<16x128xf32>
    %5 = tpu.matmul %0, %4, %cst {dimension_numbers = #tpu.dot_dimension_numbers<[1], [0], [0], [1], [0, 0, 1, 1], [], []>} : vector<16x768xbf16>, vector<768x128xbf16>, vector<16x128xf32> -> vector<16x128xf32>
    %c0_5 = arith.constant 0 : index
    %c0_6 = arith.constant 0 : index
    %6 = vector.load %arg3[%c0_5, %c0_6] : memref<1x896xf32, #tpu.memory_space<vmem>>, vector<1x128xf32>
    %7 = vector.broadcast %6 : vector<1x128xf32> to vector<16x128xf32>
    %8 = arith.addf %5, %7 : vector<16x128xf32>
    %c768_7 = arith.constant 768 : index
    %c0_8 = arith.constant 0 : index
    %9 = vector.load %arg2[%c768_7, %c0_8] : memref<1664x256xbf16, #tpu.memory_space<vmem>>, vector<128x128xbf16>
    %cst_9 = arith.constant dense<0.000000e+00> : vector<16x128xf32>
    %10 = tpu.matmul %1, %9, %cst_9 {dimension_numbers = #tpu.dot_dimension_numbers<[1], [0], [0], [1], [0, 0, 1, 1], [], []>} : vector<16x128xbf16>, vector<128x128xbf16>, vector<16x128xf32> -> vector<16x128xf32>
    %c0_10 = arith.constant 0 : index
    %c128 = arith.constant 128 : index
    %11 = vector.load %arg3[%c0_10, %c128] : memref<1x896xf32, #tpu.memory_space<vmem>>, vector<1x128xf32>
    %12 = vector.broadcast %11 : vector<1x128xf32> to vector<16x128xf32>
    %13 = arith.addf %10, %12 : vector<16x128xf32>
    %cst_11 = arith.constant 0.000000e+00 : f32
    %14 = vector.broadcast %cst_11 : f32 to vector<16x128xf32>
    %15 = arith.maximumf %13, %14 : vector<16x128xf32>
    %16 = arith.truncf %15 : vector<16x128xf32> to vector<16x128xbf16>
    %c896_12 = arith.constant 896 : index
    %c0_13 = arith.constant 0 : index
    %17 = vector.load %arg2[%c896_12, %c0_13] : memref<1664x256xbf16, #tpu.memory_space<vmem>>, vector<128x128xbf16>
    %cst_14 = arith.constant dense<0.000000e+00> : vector<16x128xf32>
    %18 = tpu.matmul %16, %17, %cst_14 {dimension_numbers = #tpu.dot_dimension_numbers<[1], [0], [0], [1], [0, 0, 1, 1], [], []>} : vector<16x128xbf16>, vector<128x128xbf16>, vector<16x128xf32> -> vector<16x128xf32>
    %c0_15 = arith.constant 0 : index
    %c256 = arith.constant 256 : index
    %19 = vector.load %arg3[%c0_15, %c256] : memref<1x896xf32, #tpu.memory_space<vmem>>, vector<1x128xf32>
    %20 = vector.broadcast %19 : vector<1x128xf32> to vector<16x128xf32>
    %21 = arith.addf %18, %20 : vector<16x128xf32>
    %22 = arith.truncf %21 : vector<16x128xf32> to vector<16x128xbf16>
    %c1024 = arith.constant 1024 : index
    %c0_16 = arith.constant 0 : index
    %23 = vector.load %arg2[%c1024, %c0_16] : memref<1664x256xbf16, #tpu.memory_space<vmem>>, vector<128x256xbf16>
    %cst_17 = arith.constant dense<0.000000e+00> : vector<16x256xf32>
    %24 = tpu.matmul %22, %23, %cst_17 {dimension_numbers = #tpu.dot_dimension_numbers<[1], [0], [0], [1], [0, 0, 1, 1], [], []>} : vector<16x128xbf16>, vector<128x256xbf16>, vector<16x256xf32> -> vector<16x256xf32>
    %25 = arith.truncf %8 : vector<16x128xf32> to vector<16x128xbf16>
    %c1152 = arith.constant 1152 : index
    %c0_18 = arith.constant 0 : index
    %26 = vector.load %arg2[%c1152, %c0_18] : memref<1664x256xbf16, #tpu.memory_space<vmem>>, vector<128x256xbf16>
    %cst_19 = arith.constant dense<0.000000e+00> : vector<16x256xf32>
    %27 = tpu.matmul %25, %26, %cst_19 {dimension_numbers = #tpu.dot_dimension_numbers<[1], [0], [0], [1], [0, 0, 1, 1], [], []>} : vector<16x128xbf16>, vector<128x256xbf16>, vector<16x256xf32> -> vector<16x256xf32>
    %28 = arith.addf %24, %27 : vector<16x256xf32>
    %c0_20 = arith.constant 0 : index
    %c384 = arith.constant 384 : index
    %29 = vector.load %arg3[%c0_20, %c384] : memref<1x896xf32, #tpu.memory_space<vmem>>, vector<1x256xf32>
    %30 = vector.broadcast %29 : vector<1x256xf32> to vector<16x256xf32>
    %31 = arith.addf %28, %30 : vector<16x256xf32>
    %32 = vector.extract_strided_slice %31 {offsets = [0, 0], sizes = [16, 128], strides = [1, 1]} : vector<16x256xf32> to vector<16x128xf32>
    %33 = vector.extract_strided_slice %31 {offsets = [0, 128], sizes = [16, 128], strides = [1, 1]} : vector<16x256xf32> to vector<16x128xf32>
    %cst_21 = arith.constant 5.000000e-01 : f32
    %34 = vector.broadcast %cst_21 : f32 to vector<16x128xf32>
    %35 = arith.mulf %34, %33 : vector<16x128xf32>
    %36 = math.exp %35 : vector<16x128xf32>
    %37 = arith.mulf %36, %3 : vector<16x128xf32>
    %38 = arith.addf %32, %37 : vector<16x128xf32>
    %39 = arith.truncf %38 : vector<16x128xf32> to vector<16x128xbf16>
    %c1280 = arith.constant 1280 : index
    %c0_22 = arith.constant 0 : index
    %40 = vector.load %arg2[%c1280, %c0_22] : memref<1664x256xbf16, #tpu.memory_space<vmem>>, vector<128x128xbf16>
    %cst_23 = arith.constant dense<0.000000e+00> : vector<16x128xf32>
    %41 = tpu.matmul %39, %40, %cst_23 {dimension_numbers = #tpu.dot_dimension_numbers<[1], [0], [0], [1], [0, 0, 1, 1], [], []>} : vector<16x128xbf16>, vector<128x128xbf16>, vector<16x128xf32> -> vector<16x128xf32>
    %42 = arith.truncf %8 : vector<16x128xf32> to vector<16x128xbf16>
    %c1408 = arith.constant 1408 : index
    %c0_24 = arith.constant 0 : index
    %43 = vector.load %arg2[%c1408, %c0_24] : memref<1664x256xbf16, #tpu.memory_space<vmem>>, vector<128x128xbf16>
    %cst_25 = arith.constant dense<0.000000e+00> : vector<16x128xf32>
    %44 = tpu.matmul %42, %43, %cst_25 {dimension_numbers = #tpu.dot_dimension_numbers<[1], [0], [0], [1], [0, 0, 1, 1], [], []>} : vector<16x128xbf16>, vector<128x128xbf16>, vector<16x128xf32> -> vector<16x128xf32>
    %45 = arith.addf %41, %44 : vector<16x128xf32>
    %c0_26 = arith.constant 0 : index
    %c640 = arith.constant 640 : index
    %46 = vector.load %arg3[%c0_26, %c640] : memref<1x896xf32, #tpu.memory_space<vmem>>, vector<1x128xf32>
    %47 = vector.broadcast %46 : vector<1x128xf32> to vector<16x128xf32>
    %48 = arith.addf %45, %47 : vector<16x128xf32>
    %cst_27 = arith.constant 0.000000e+00 : f32
    %49 = vector.broadcast %cst_27 : f32 to vector<16x128xf32>
    %50 = arith.maximumf %48, %49 : vector<16x128xf32>
    %51 = arith.truncf %50 : vector<16x128xf32> to vector<16x128xbf16>
    %c1536 = arith.constant 1536 : index
    %c0_28 = arith.constant 0 : index
    %52 = vector.load %arg2[%c1536, %c0_28] : memref<1664x256xbf16, #tpu.memory_space<vmem>>, vector<128x128xbf16>
    %cst_29 = arith.constant dense<0.000000e+00> : vector<16x128xf32>
    %53 = tpu.matmul %51, %52, %cst_29 {dimension_numbers = #tpu.dot_dimension_numbers<[1], [0], [0], [1], [0, 0, 1, 1], [], []>} : vector<16x128xbf16>, vector<128x128xbf16>, vector<16x128xf32> -> vector<16x128xf32>
    %c0_30 = arith.constant 0 : index
    %c768_31 = arith.constant 768 : index
    %54 = vector.load %arg3[%c0_30, %c768_31] : memref<1x896xf32, #tpu.memory_space<vmem>>, vector<1x128xf32>
    %55 = vector.broadcast %54 : vector<1x128xf32> to vector<16x128xf32>
    %56 = arith.addf %53, %55 : vector<16x128xf32>
    %57 = arith.negf %56 : vector<16x128xf32>
    %58 = math.exp %57 : vector<16x128xf32>
    %cst_32 = arith.constant 1.000000e+00 : f32
    %59 = vector.broadcast %cst_32 : f32 to vector<16x128xf32>
    %60 = arith.addf %59, %58 : vector<16x128xf32>
    %61 = arith.divf %59, %60 : vector<16x128xf32>
    %c0_33 = arith.constant 0 : index
    %c0_34 = arith.constant 0 : index
    %62 = vector.load %arg4[%c0_33, %c0_34] : memref<16x384xf32, #tpu.memory_space<vmem>>, vector<16x128xf32>
    tpu.vector_store %arg4[%c0_33, %c0_34], %61 {strides = array<i32>} : memref<16x384xf32, #tpu.memory_space<vmem>>, vector<16x128xf32>,
    %c0_35 = arith.constant 0 : index
    %c128_36 = arith.constant 128 : index
    %63 = vector.load %arg4[%c0_35, %c128_36] : memref<16x384xf32, #tpu.memory_space<vmem>>, vector<16x128xf32>
    tpu.vector_store %arg4[%c0_35, %c128_36], %32 {strides = array<i32>} : memref<16x384xf32, #tpu.memory_space<vmem>>, vector<16x128xf32>,
    %c0_37 = arith.constant 0 : index
    %c256_38 = arith.constant 256 : index
    %64 = vector.load %arg4[%c0_37, %c256_38] : memref<16x384xf32, #tpu.memory_space<vmem>>, vector<16x128xf32>
    tpu.vector_store %arg4[%c0_37, %c256_38], %33 {strides = array<i32>} : memref<16x384xf32, #tpu.memory_space<vmem>>, vector<16x128xf32>,
    return
  }
  func.func @transform_0(%arg0: i32) -> (i32, i32) {
    %c0_i32 = arith.constant 0 : i32
    %c0_i32_0 = arith.constant 0 : i32
    return %arg0, %c0_i32 : i32, i32
  }
  func.func @transform_1(%arg0: i32) -> (i32, i32) {
    %c0_i32 = arith.constant 0 : i32
    %c0_i32_0 = arith.constant 0 : i32
    %c0_i32_1 = arith.constant 0 : i32
    return %c0_i32, %c0_i32_0 : i32, i32
  }
  func.func @transform_2(%arg0: i32) -> (i32, i32) {
    %c0_i32 = arith.constant 0 : i32
    %c0_i32_0 = arith.constant 0 : i32
    %c0_i32_1 = arith.constant 0 : i32
    return %c0_i32, %c0_i32_0 : i32, i32
  }
  func.func @transform_3(%arg0: i32) -> (i32, i32) {
    %c0_i32 = arith.constant 0 : i32
    %c0_i32_0 = arith.constant 0 : i32
    return %arg0, %c0_i32 : i32, i32
  }
}

</mosaic_0001>

<llo_original>
// kernel: textcvae_forward.1
$region0: #{textcvae_forward.1}
  #allocation0 [shape = 'u32[]', space=smem, size = 0x4, offset = 0x4, fixed_abs, tag = 'smem constant byte address 0x4 - core index']
  #allocation1 [shape = 'u32[144,128]{1,0:T(1,128)}', space=vmem, size = 0x12000, scoped, tag = 'internal scratch']
  %s0 = inlined_call_operand.vmem [shape: bf16[16,1024], index: 0, kind: input, shape index: {}]
  %s1 = inlined_call_operand.hbm [shape: bf16[1664,256], index: 1, kind: input, shape index: {}]
  %s2 = inlined_call_operand.vmem [shape: f32[1,896], index: 2, kind: input, shape index: {}]
  %s3 = inlined_call_operand.vmem [shape: f32[16,384], index: 3, kind: output, shape index: {}]
  %s4 = sld [smem:[#allocation0]]
  $region26: #{textcvae_forward.1} parent=0
    _
  %s6 = ssub.s32 1, %s4
  %s7 = scalar_select 0, %s6, %s4
  $region1: #{textcvae_forward.1} parent=0
    #allocation2 [shape = 'u8[851968]{0}', space=vmem, size = 0xd0000, scoped, tag = 'input window, operand 1, single buffered']
    #allocation3 [shape = 's32[1]{0}', space=sflag, size = 0x4, scoped, tag = 'scoped memory for textcvae_forward.1']
    %8 = vsyncpa [#allocation3], 0
    // Predicated region
    $region2: #{textcvae_forward.1} parent=1 // pred_check
      _
    $region3: #{textcvae_forward.1} parent=1 // pred_check_branch
      %10 = sbr.rel (0) target = $region5
    $region4: #{textcvae_forward.1} parent=1 // pred_region
      _
    $region5: #{textcvae_forward.1} parent=1 // pred_fallthru
      _
    // Predicated region
    $region6: #{textcvae_forward.1} parent=1 // pred_check
      _
    $region7: #{textcvae_forward.1} parent=1 // pred_check_branch
      %12 = sbr.rel (0) target = $region9
    $region8: #{textcvae_forward.1} parent=1 // pred_region
      %s14 = ssub.s32 26624, 26624
      %15 = vsyncadd [#allocation3], %s14
      %s16 = sshll.u32 [#allocation2], 4
      %s17 = int_to_ptr.vmem [resolvable:$true] %s16
      %22 = dma.hbm_to_vmem [thread:$0]  %s1, 26624, %s17, [#allocation3], 128, 128, 8
    $region9: #{textcvae_forward.1} parent=1 // pred_fallthru
      _
    // Predicated region
    $region10: #{textcvae_forward.1} parent=1 // pred_check
      _
    $region11: #{textcvae_forward.1} parent=1 // pred_check_branch
      %24 = sbr.rel (0) target = $region13
    $region12: #{textcvae_forward.1} parent=1 // pred_region
      _
    $region13: #{textcvae_forward.1} parent=1 // pred_fallthru
      _
    // Predicated region
    $region14: #{textcvae_forward.1} parent=1 // pred_check
      _
    $region15: #{textcvae_forward.1} parent=1 // pred_check_branch
      %26 = sbr.rel (0) target = $region17
    $region16: #{textcvae_forward.1} parent=1 // pred_region
      %27 = dma.done [#allocation3], 26624
    $region17: #{textcvae_forward.1} parent=1 // pred_fallthru
      _
    %v29 = vld [vmem:[%s0] sm:$0xff]
    %v30 = vld [vmem:[%s0 + $0x8] sm:$0xff]
    %v31 = vld [vmem:[%s0 + $0x10] sm:$0xff]
    %v32 = vld [vmem:[%s0 + $0x20] sm:$0xff]
    %v33 = vld [vmem:[%s0 + $0x28] sm:$0xff]
    %v34 = vld [vmem:[%s0 + $0x30] sm:$0xff]
    %v35 = vld [vmem:[%s0 + $0x18] sm:$0xf]
    %v36 = vld [vmem:[%s0 + $0x38] sm:$0xf]
    %v37 = vld [vmem:[%s0 + $0x1c] sm:$0xf]
    %v38 = vld [vmem:[%s0 + $0x3c] sm:$0xf]
    %v39 = vunpack.c.l.bf16 %v37
    %v40 = vunpack.c.l.bf16 %v38
    %v41 = vld [vmem:[#allocation2] sm:$0xf]
    %v42 = vld [vmem:[#allocation2 + $0x8] sm:$0xf]
    %v43 = vld [vmem:[#allocation2 + $0x10] sm:$0xf]
    %v44 = vld [vmem:[#allocation2 + $0x18] sm:$0xf]
    %v45 = vld [vmem:[#allocation2 + $0x20] sm:$0xf]
    %v46 = vld [vmem:[#allocation2 + $0x28] sm:$0xf]
    %v47 = vld [vmem:[#allocation2 + $0x30] sm:$0xf]
    %v48 = vld [vmem:[#allocation2 + $0x38] sm:$0xf]
    %v49 = vld [vmem:[#allocation2 + $0x40] sm:$0xf]
    %v50 = vld [vmem:[#allocation2 + $0x48] sm:$0xf]
    %v51 = vld [vmem:[#allocation2 + $0x50] sm:$0xf]
    %v52 = vld [vmem:[#allocation2 + $0x58] sm:$0xf]
    %v53 = vld [vmem:[#allocation2 + $0x60] sm:$0xf]
    %v54 = vld [vmem:[#allocation2 + $0x68] sm:$0xf]
    %v55 = vld [vmem:[#allocation2 + $0x70] sm:$0xf]
    %v56 = vld [vmem:[#allocation2 + $0x78] sm:$0xf]
    %v57 = vld [vmem:[#allocation2 + $0x80] sm:$0xf]
    %v58 = vld [vmem:[#allocation2 + $0x88] sm:$0xf]
    %v59 = vld [vmem:[#allocation2 + $0x90] sm:$0xf]
    %v60 = vld [vmem:[#allocation2 + $0x98] sm:$0xf]
    %v61 = vld [vmem:[#allocation2 + $0xa0] sm:$0xf]
    %v62 = vld [vmem:[#allocation2 + $0xa8] sm:$0xf]
    %v63 = vld [vmem:[#allocation2 + $0xb0] sm:$0xf]
    %v64 = vld [vmem:[#allocation2 + $0xb8] sm:$0xf]
    %v65 = vld [vmem:[#allocation2 + $0xc0] sm:$0xf]
    %v66 = vld [vmem:[#allocation2 + $0xc8] sm:$0xf]
    %v67 = vld [vmem:[#allocation2 + $0xd0] sm:$0xf]
    %v68 = vld [vmem:[#allocation2 + $0xd8] sm:$0xf]
    %v69 = vld [vmem:[#allocation2 + $0xe0] sm:$0xf]
    %v70 = vld [vmem:[#allocation2 + $0xe8] sm:$0xf]
    %v71 = vld [vmem:[#allocation2 + $0xf0] sm:$0xf]
    %v72 = vld [vmem:[#allocation2 + $0xf8] sm:$0xf]
    %v73 = vld [vmem:[#allocation2 + $0x100] sm:$0xf]
    %v74 = vld [vmem:[#allocation2 + $0x108] sm:$0xf]
    %v75 = vld [vmem:[#allocation2 + $0x110] sm:$0xf]
    %v76 = vld [vmem:[#allocation2 + $0x118] sm:$0xf]
    %v77 = vld [vmem:[#allocation2 + $0x120] sm:$0xf]
    %v78 = vld [vmem:[#allocation2 + $0x128] sm:$0xf]
    %v79 = vld [vmem:[#allocation2 + $0x130] sm:$0xf]
    %v80 = vld [vmem:[#allocation2 + $0x138] sm:$0xf]
    %v81 = vld [vmem:[#allocation2 + $0x140] sm:$0xf]
    %v82 = vld [vmem:[#allocation2 + $0x148] sm:$0xf]
    %v83 = vld [vmem:[#allocation2 + $0x150] sm:$0xf]
    %v84 = vld [vmem:[#allocation2 + $0x158] sm:$0xf]
    %v85 = vld [vmem:[#allocation2 + $0x160] sm:$0xf]
    %v86 = vld [vmem:[#allocation2 + $0x168] sm:$0xf]
    %v87 = vld [vmem:[#allocation2 + $0x170] sm:$0xf]
    %v88 = vld [vmem:[#allocation2 + $0x178] sm:$0xf]
    %v89 = vld [vmem:[#allocation2 + $0x180] sm:$0xf]
    %v90 = vld [vmem:[#allocation2 + $0x188] sm:$0xf]
    %v91 = vld [vmem:[#allocation2 + $0x190] sm:$0xf]
    %v92 = vld [vmem:[#allocation2 + $0x198] sm:$0xf]
    %v93 = vld [vmem:[#allocation2 + $0x1a0] sm:$0xf]
    %v94 = vld [vmem:[#allocation2 + $0x1a8] sm:$0xf]
    %v95 = vld [vmem:[#allocation2 + $0x1b0] sm:$0xf]
    %v96 = vld [vmem:[#allocation2 + $0x1b8] sm:$0xf]
    %v97 = vld [vmem:[#allocation2 + $0x1c0] sm:$0xf]
    %v98 = vld [vmem:[#allocation2 + $0x1c8] sm:$0xf]
    %v99 = vld [vmem:[#allocation2 + $0x1d0] sm:$0xf]
    %v100 = vld [vmem:[#allocation2 + $0x1d8] sm:$0xf]
    %v101 = vld [vmem:[#allocation2 + $0x1e0] sm:$0xf]
    %v102 = vld [vmem:[#allocation2 + $0x1e8] sm:$0xf]
    %v103 = vld [vmem:[#allocation2 + $0x1f0] sm:$0xf]
    %v104 = vld [vmem:[#allocation2 + $0x1f8] sm:$0xf]
    %v105 = vld [vmem:[#allocation2 + $0x200] sm:$0xf]
    %v106 = vld [vmem:[#allocation2 + $0x208] sm:$0xf]
    %v107 = vld [vmem:[#allocation2 + $0x210] sm:$0xf]
    %v108 = vld [vmem:[#allocation2 + $0x218] sm:$0xf]
    %v109 = vld [vmem:[#allocation2 + $0x220] sm:$0xf]
    %v110 = vld [vmem:[#allocation2 + $0x228] sm:$0xf]
    %v111 = vld [vmem:[#allocation2 + $0x230] sm:$0xf]
    %v112 = vld [vmem:[#allocation2 + $0x238] sm:$0xf]
    %v113 = vld [vmem:[#allocation2 + $0x240] sm:$0xf]
    %v114 = vld [vmem:[#allocation2 + $0x248] sm:$0xf]
    %v115 = vld [vmem:[#allocation2 + $0x250] sm:$0xf]
    %v116 = vld [vmem:[#allocation2 + $0x258] sm:$0xf]
    %v117 = vld [vmem:[#allocation2 + $0x260] sm:$0xf]
    %v118 = vld [vmem:[#allocation2 + $0x268] sm:$0xf]
    %v119 = vld [vmem:[#allocation2 + $0x270] sm:$0xf]
    %v120 = vld [vmem:[#allocation2 + $0x278] sm:$0xf]
    %v121 = vld [vmem:[#allocation2 + $0x280] sm:$0xf]
    %v122 = vld [vmem:[#allocation2 + $0x288] sm:$0xf]
    %v123 = vld [vmem:[#allocation2 + $0x290] sm:$0xf]
    %v124 = vld [vmem:[#allocation2 + $0x298] sm:$0xf]
    %v125 = vld [vmem:[#allocation2 + $0x2a0] sm:$0xf]
    %v126 = vld [vmem:[#allocation2 + $0x2a8] sm:$0xf]
    %v127 = vld [vmem:[#allocation2 + $0x2b0] sm:$0xf]
    %v128 = vld [vmem:[#allocation2 + $0x2b8] sm:$0xf]
    %v129 = vld [vmem:[#allocation2 + $0x2c0] sm:$0xf]
    %v130 = vld [vmem:[#allocation2 + $0x2c8] sm:$0xf]
    %v131 = vld [vmem:[#allocation2 + $0x2d0] sm:$0xf]
    %v132 = vld [vmem:[#allocation2 + $0x2d8] sm:$0xf]
    %v133 = vld [vmem:[#allocation2 + $0x2e0] sm:$0xf]
    %v134 = vld [vmem:[#allocation2 + $0x2e8] sm:$0xf]
    %v135 = vld [vmem:[#allocation2 + $0x2f0] sm:$0xf]
    %v136 = vld [vmem:[#allocation2 + $0x2f8] sm:$0xf]
    %v137 = vld [vmem:[%s2] sm:$0x1]
    %v139 = vlaneseq
    %v140 = vshrl.u32 %v139, 7
    %v141 = vsub.s32 0, %v140
    %v142 = vrot.slane %v137, %v141
    %v150 = vunpack.c.l.b16 %v29
    %v151 = vunpack.c.h.b16 %v29
    %v152 = vunpack.c.l.b16 %v30
    %v153 = vunpack.c.h.b16 %v30
    %v154 = vunpack.c.l.b16 %v31
    %v155 = vunpack.c.h.b16 %v31
    %v156 = vunpack.c.l.b16 %v32
    %v157 = vunpack.c.h.b16 %v32
    %v158 = vunpack.c.l.b16 %v33
    %v159 = vunpack.c.h.b16 %v33
    %v160 = vunpack.c.l.b16 %v34
    %v161 = vunpack.c.h.b16 %v34
    %v162 = vpack.c.b16 %v156, %v150
    %v163 = vpack.c.b16 %v157, %v151
    %v164 = vpack.c.b16 %v158, %v152
    %v165 = vpack.c.b16 %v159, %v153
    %v166 = vpack.c.b16 %v160, %v154
    %v167 = vpack.c.b16 %v161, %v155
    %v270 = vunpack.c.l.b16 %v41
    %v271 = vunpack.c.l.b16 %v42
    %v272 = vunpack.c.l.b16 %v43
    %v273 = vunpack.c.l.b16 %v44
    %v274 = vunpack.c.l.b16 %v45
    %v275 = vunpack.c.l.b16 %v46
    %v276 = vunpack.c.l.b16 %v47
    %v277 = vunpack.c.l.b16 %v48
    %v278 = vunpack.c.l.b16 %v49
    %v279 = vunpack.c.l.b16 %v50
    %v280 = vunpack.c.l.b16 %v51
    %v281 = vunpack.c.l.b16 %v52
    %v282 = vunpack.c.l.b16 %v53
    %v283 = vunpack.c.l.b16 %v54
    %v284 = vunpack.c.l.b16 %v55
    %v285 = vunpack.c.l.b16 %v56
    %v286 = vunpack.c.l.b16 %v57
    %v287 = vunpack.c.l.b16 %v58
    %v288 = vunpack.c.l.b16 %v59
    %v289 = vunpack.c.l.b16 %v60
    %v290 = vunpack.c.l.b16 %v61
    %v291 = vunpack.c.l.b16 %v62
    %v292 = vunpack.c.l.b16 %v63
    %v293 = vunpack.c.l.b16 %v64
    %v294 = vunpack.c.l.b16 %v65
    %v295 = vunpack.c.l.b16 %v66
    %v296 = vunpack.c.l.b16 %v67
    %v297 = vunpack.c.l.b16 %v68
    %v298 = vunpack.c.l.b16 %v69
    %v299 = vunpack.c.l.b16 %v70
    %v300 = vunpack.c.l.b16 %v71
    %v301 = vunpack.c.l.b16 %v72
    %v302 = vunpack.c.l.b16 %v73
    %v303 = vunpack.c.l.b16 %v74
    %v304 = vunpack.c.l.b16 %v75
    %v305 = vunpack.c.l.b16 %v76
    %v306 = vunpack.c.l.b16 %v77
    %v307 = vunpack.c.l.b16 %v78
    %v308 = vunpack.c.l.b16 %v79
    %v309 = vunpack.c.l.b16 %v80
    %v310 = vunpack.c.l.b16 %v81
    %v311 = vunpack.c.l.b16 %v82
    %v312 = vunpack.c.l.b16 %v83
    %v313 = vunpack.c.l.b16 %v84
    %v314 = vunpack.c.l.b16 %v85
    %v315 = vunpack.c.l.b16 %v86
    %v316 = vunpack.c.l.b16 %v87
    %v317 = vunpack.c.l.b16 %v88
    %v318 = vunpack.c.l.b16 %v89
    %v319 = vunpack.c.l.b16 %v90
    %v320 = vunpack.c.l.b16 %v91
    %v321 = vunpack.c.l.b16 %v92
    %v322 = vunpack.c.l.b16 %v93
    %v323 = vunpack.c.l.b16 %v94
    %v324 = vunpack.c.l.b16 %v95
    %v325 = vunpack.c.l.b16 %v96
    %v326 = vunpack.c.l.b16 %v97
    %v327 = vunpack.c.l.b16 %v98
    %v328 = vunpack.c.l.b16 %v99
    %v329 = vunpack.c.l.b16 %v100
    %v330 = vunpack.c.l.b16 %v101
    %v331 = vunpack.c.l.b16 %v102
    %v332 = vunpack.c.l.b16 %v103
    %v333 = vunpack.c.l.b16 %v104
    %v334 = vunpack.c.l.b16 %v105
    %v335 = vunpack.c.l.b16 %v106
    %v336 = vunpack.c.l.b16 %v107
    %v337 = vunpack.c.l.b16 %v108
    %v338 = vunpack.c.l.b16 %v109
    %v339 = vunpack.c.l.b16 %v110
    %v340 = vunpack.c.l.b16 %v111
    %v341 = vunpack.c.l.b16 %v112
    %v342 = vunpack.c.l.b16 %v113
    %v343 = vunpack.c.l.b16 %v114
    %v344 = vunpack.c.l.b16 %v115
    %v345 = vunpack.c.l.b16 %v116
    %v346 = vunpack.c.l.b16 %v117
    %v347 = vunpack.c.l.b16 %v118
    %v348 = vunpack.c.l.b16 %v119
    %v349 = vunpack.c.l.b16 %v120
    %v350 = vunpack.c.l.b16 %v121
    %v351 = vunpack.c.l.b16 %v122
    %v352 = vunpack.c.l.b16 %v123
    %v353 = vunpack.c.l.b16 %v124
    %v354 = vunpack.c.l.b16 %v125
    %v355 = vunpack.c.l.b16 %v126
    %v356 = vunpack.c.l.b16 %v127
    %v357 = vunpack.c.l.b16 %v128
    %v358 = vunpack.c.l.b16 %v129
    %v359 = vunpack.c.l.b16 %v130
    %v360 = vunpack.c.l.b16 %v131
    %v361 = vunpack.c.l.b16 %v132
    %v362 = vunpack.c.l.b16 %v133
    %v363 = vunpack.c.l.b16 %v134
    %v364 = vunpack.c.l.b16 %v135
    %v365 = vunpack.c.l.b16 %v136
    %v366 = vpack.c.b16 %v271, %v270
    %v367 = vpack.c.b16 %v273, %v272
    %v368 = vpack.c.b16 %v275, %v274
    %v369 = vpack.c.b16 %v277, %v276
    %v370 = vpack.c.b16 %v279, %v278
    %v371 = vpack.c.b16 %v281, %v280
    %v372 = vpack.c.b16 %v283, %v282
    %v373 = vpack.c.b16 %v285, %v284
    %v374 = vpack.c.b16 %v287, %v286
    %v375 = vpack.c.b16 %v289, %v288
    %v376 = vpack.c.b16 %v291, %v290
    %v377 = vpack.c.b16 %v293, %v292
    %v378 = vpack.c.b16 %v295, %v294
    %v379 = vpack.c.b16 %v297, %v296
    %v380 = vpack.c.b16 %v299, %v298
    %v381 = vpack.c.b16 %v301, %v300
    %v382 = vpack.c.b16 %v303, %v302
    %v383 = vpack.c.b16 %v305, %v304
    %v384 = vpack.c.b16 %v307, %v306
    %v385 = vpack.c.b16 %v309, %v308
    %v386 = vpack.c.b16 %v311, %v310
    %v387 = vpack.c.b16 %v313, %v312
    %v388 = vpack.c.b16 %v315, %v314
    %v389 = vpack.c.b16 %v317, %v316
    %v390 = vpack.c.b16 %v319, %v318
    %v391 = vpack.c.b16 %v321, %v320
    %v392 = vpack.c.b16 %v323, %v322
    %v393 = vpack.c.b16 %v325, %v324
    %v394 = vpack.c.b16 %v327, %v326
    %v395 = vpack.c.b16 %v329, %v328
    %v396 = vpack.c.b16 %v331, %v330
    %v397 = vpack.c.b16 %v333, %v332
    %v398 = vpack.c.b16 %v335, %v334
    %v399 = vpack.c.b16 %v337, %v336
    %v400 = vpack.c.b16 %v339, %v338
    %v401 = vpack.c.b16 %v341, %v340
    %v402 = vpack.c.b16 %v343, %v342
    %v403 = vpack.c.b16 %v345, %v344
    %v404 = vpack.c.b16 %v347, %v346
    %v405 = vpack.c.b16 %v349, %v348
    %v406 = vpack.c.b16 %v351, %v350
    %v407 = vpack.c.b16 %v353, %v352
    %v408 = vpack.c.b16 %v355, %v354
    %v409 = vpack.c.b16 %v357, %v356
    %v410 = vpack.c.b16 %v359, %v358
    %v411 = vpack.c.b16 %v361, %v360
    %v412 = vpack.c.b16 %v363, %v362
    %v413 = vpack.c.b16 %v365, %v364
    %462 = vmatprep.subr.bf16.mxu0 0
    %463 = vmatpush1.bf16.msra.mxu0 %v366
    %464 = vmatprep.subr.bf16.mxu0 0
    %465 = vmatpush1.bf16.msra.mxu0 %v367
    %466 = vmatprep.subr.bf16.mxu0 0
    %467 = vmatpush1.bf16.msra.mxu0 %v368
    %468 = vmatprep.subr.bf16.mxu0 0
    %469 = vmatpush1.bf16.msra.mxu0 %v369
    %470 = vmatprep.subr.bf16.mxu0 0
    %471 = vmatpush1.bf16.msra.mxu0 %v370
    %472 = vmatprep.subr.bf16.mxu0 0
    %473 = vmatpush1.bf16.msra.mxu0 %v371
    %474 = vmatprep.subr.bf16.mxu0 0
    %475 = vmatpush1.bf16.msra.mxu0 %v372
    %476 = vmatprep.subr.bf16.mxu0 0
    %477 = vmatpush1.bf16.msra.mxu0 %v373
    %478 = vmatprep.subr.bf16.mxu0 0
    %479 = vmatpush1.bf16.msra.mxu0 %v374
    %480 = vmatprep.subr.bf16.mxu0 0
    %481 = vmatpush1.bf16.msra.mxu0 %v375
    %482 = vmatprep.subr.bf16.mxu0 0
    %483 = vmatpush1.bf16.msra.mxu0 %v376
    %484 = vmatprep.subr.bf16.mxu0 0
    %485 = vmatpush1.bf16.msra.mxu0 %v377
    %486 = vmatprep.subr.bf16.mxu0 0
    %487 = vmatpush1.bf16.msra.mxu0 %v378
    %488 = vmatprep.subr.bf16.mxu0 0
    %489 = vmatpush1.bf16.msra.mxu0 %v379
    %490 = vmatprep.subr.bf16.mxu0 0
    %491 = vmatpush1.bf16.msra.mxu0 %v380
    %492 = vmatprep.subr.bf16.mxu0 0
    %493 = vmatpush1.bf16.msra.mxu0 %v381
    %494 = vmatprep.mubr.bf16.mxu0 %v163
    %495 = vmatmul.mubr.bf16.gmra.mrb[0].mxu0 %v162
    %v496 = vpop.f32.mrb[0].mxu0
    %v497 = vadd.f32 %v142, %v496
    %v498 = vpop.f32.mrb[0].mxu0
    %v499 = vpop.f32.mrb[0].mxu0
    %v500 = vadd.f32 %v142, %v499
    %v501 = vpop.f32.mrb[0].mxu0
    %502 = vdwg.mxu0
    %503 = vmatprep.subr.bf16.mxu0 0
    %504 = vmatpush1.bf16.msra.mxu0 %v382
    %505 = vmatprep.subr.bf16.mxu0 0
    %506 = vmatpush1.bf16.msra.mxu0 %v383
    %507 = vmatprep.subr.bf16.mxu0 0
    %508 = vmatpush1.bf16.msra.mxu0 %v384
    %509 = vmatprep.subr.bf16.mxu0 0
    %510 = vmatpush1.bf16.msra.mxu0 %v385
    %511 = vmatprep.subr.bf16.mxu0 0
    %512 = vmatpush1.bf16.msra.mxu0 %v386
    %513 = vmatprep.subr.bf16.mxu0 0
    %514 = vmatpush1.bf16.msra.mxu0 %v387
    %515 = vmatprep.subr.bf16.mxu0 0
    %516 = vmatpush1.bf16.msra.mxu0 %v388
    %517 = vmatprep.subr.bf16.mxu0 0
    %518 = vmatpush1.bf16.msra.mxu0 %v389
    %519 = vmatprep.subr.bf16.mxu0 0
    %520 = vmatpush1.bf16.msra.mxu0 %v390
    %521 = vmatprep.subr.bf16.mxu0 0
    %522 = vmatpush1.bf16.msra.mxu0 %v391
    %523 = vmatprep.subr.bf16.mxu0 0
    %524 = vmatpush1.bf16.msra.mxu0 %v392
    %525 = vmatprep.subr.bf16.mxu0 0
    %526 = vmatpush1.bf16.msra.mxu0 %v393
    %527 = vmatprep.subr.bf16.mxu0 0
    %528 = vmatpush1.bf16.msra.mxu0 %v394
    %529 = vmatprep.subr.bf16.mxu0 0
    %530 = vmatpush1.bf16.msra.mxu0 %v395
    %531 = vmatprep.subr.bf16.mxu0 0
    %532 = vmatpush1.bf16.msra.mxu0 %v396
    %533 = vmatprep.subr.bf16.mxu0 0
    %534 = vmatpush1.bf16.msra.mxu0 %v397
    %535 = vmatprep.mubr.bf16.mxu0 %v165
    %536 = vmatmul.mubr.bf16.gmra.mrb[0].mxu0 %v164
    %v537 = vpop.f32.mrb[0].mxu0
    %v538 = vadd.f32 %v497, %v537
    %v539 = vpop.f32.mrb[0].mxu0
    %v540 = vpop.f32.mrb[0].mxu0
    %v541 = vadd.f32 %v500, %v540
    %v542 = vpop.f32.mrb[0].mxu0
    %543 = vdwg.mxu0
    %544 = vmatprep.subr.bf16.mxu0 0
    %545 = vmatpush1.bf16.msra.mxu0 %v398
    %546 = vmatprep.subr.bf16.mxu0 0
    %547 = vmatpush1.bf16.msra.mxu0 %v399
    %548 = vmatprep.subr.bf16.mxu0 0
    %549 = vmatpush1.bf16.msra.mxu0 %v400
    %550 = vmatprep.subr.bf16.mxu0 0
    %551 = vmatpush1.bf16.msra.mxu0 %v401
    %552 = vmatprep.subr.bf16.mxu0 0
    %553 = vmatpush1.bf16.msra.mxu0 %v402
    %554 = vmatprep.subr.bf16.mxu0 0
    %555 = vmatpush1.bf16.msra.mxu0 %v403
    %556 = vmatprep.subr.bf16.mxu0 0
    %557 = vmatpush1.bf16.msra.mxu0 %v404
    %558 = vmatprep.subr.bf16.mxu0 0
    %559 = vmatpush1.bf16.msra.mxu0 %v405
    %560 = vmatprep.subr.bf16.mxu0 0
    %561 = vmatpush1.bf16.msra.mxu0 %v406
    %562 = vmatprep.subr.bf16.mxu0 0
    %563 = vmatpush1.bf16.msra.mxu0 %v407
    %564 = vmatprep.subr.bf16.mxu0 0
    %565 = vmatpush1.bf16.msra.mxu0 %v408
    %566 = vmatprep.subr.bf16.mxu0 0
    %567 = vmatpush1.bf16.msra.mxu0 %v409
    %568 = vmatprep.subr.bf16.mxu0 0
    %569 = vmatpush1.bf16.msra.mxu0 %v410
    %570 = vmatprep.subr.bf16.mxu0 0
    %571 = vmatpush1.bf16.msra.mxu0 %v411
    %572 = vmatprep.subr.bf16.mxu0 0
    %573 = vmatpush1.bf16.msra.mxu0 %v412
    %574 = vmatprep.subr.bf16.mxu0 0
    %575 = vmatpush1.bf16.msra.mxu0 %v413
    %576 = vmatprep.mubr.bf16.mxu0 %v167
    %577 = vmatmul.mubr.bf16.gmra.mrb[0].mxu0 %v166
    %v578 = vpop.f32.mrb[0].mxu0
    %v579 = vadd.f32 %v538, %v578
    %v580 = vpop.f32.mrb[0].mxu0
    %v581 = vpop.f32.mrb[0].mxu0
    %v582 = vadd.f32 %v541, %v581
    %v583 = vpop.f32.mrb[0].mxu0
    %584 = vdwg.mxu0
    %v585 = vld [vmem:[#allocation2 + $0x300] sm:$0xf]
    %v586 = vld [vmem:[#allocation2 + $0x308] sm:$0xf]
    %v587 = vld [vmem:[#allocation2 + $0x310] sm:$0xf]
    %v588 = vld [vmem:[#allocation2 + $0x318] sm:$0xf]
    %v589 = vld [vmem:[#allocation2 + $0x320] sm:$0xf]
    %v590 = vld [vmem:[#allocation2 + $0x328] sm:$0xf]
    %v591 = vld [vmem:[#allocation2 + $0x330] sm:$0xf]
    %v592 = vld [vmem:[#allocation2 + $0x338] sm:$0xf]
    %v593 = vld [vmem:[#allocation2 + $0x340] sm:$0xf]
    %v594 = vld [vmem:[#allocation2 + $0x348] sm:$0xf]
    %v595 = vld [vmem:[#allocation2 + $0x350] sm:$0xf]
    %v596 = vld [vmem:[#allocation2 + $0x358] sm:$0xf]
    %v597 = vld [vmem:[#allocation2 + $0x360] sm:$0xf]
    %v598 = vld [vmem:[#allocation2 + $0x368] sm:$0xf]
    %v599 = vld [vmem:[#allocation2 + $0x370] sm:$0xf]
    %v600 = vld [vmem:[#allocation2 + $0x378] sm:$0xf]
    %v601 = vld [vmem:[%s2 + $0x1] sm:$0x1]
    %v603 = vlaneseq
    %v604 = vshrl.u32 %v603, 7
    %v605 = vsub.s32 0, %v604
    %v606 = vrot.slane %v601, %v605
    %v610 = vunpack.c.l.b16 %v35
    %v611 = vunpack.c.l.b16 %v36
    %v612 = vpack.c.b16 %v611, %v610
    %v630 = vunpack.c.l.b16 %v585
    %v631 = vunpack.c.l.b16 %v586
    %v632 = vunpack.c.l.b16 %v587
    %v633 = vunpack.c.l.b16 %v588
    %v634 = vunpack.c.l.b16 %v589
    %v635 = vunpack.c.l.b16 %v590
    %v636 = vunpack.c.l.b16 %v591
    %v637 = vunpack.c.l.b16 %v592
    %v638 = vunpack.c.l.b16 %v593
    %v639 = vunpack.c.l.b16 %v594
    %v640 = vunpack.c.l.b16 %v595
    %v641 = vunpack.c.l.b16 %v596
    %v642 = vunpack.c.l.b16 %v597
    %v643 = vunpack.c.l.b16 %v598
    %v644 = vunpack.c.l.b16 %v599
    %v645 = vunpack.c.l.b16 %v600
    %v646 = vpack.c.b16 %v631, %v630
    %v647 = vpack.c.b16 %v633, %v632
    %v648 = vpack.c.b16 %v635, %v634
    %v649 = vpack.c.b16 %v637, %v636
    %v650 = vpack.c.b16 %v639, %v638
    %v651 = vpack.c.b16 %v641, %v640
    %v652 = vpack.c.b16 %v643, %v642
    %v653 = vpack.c.b16 %v645, %v644
    %662 = vmatprep.subr.bf16.mxu0 0
    %663 = vmatpush1.bf16.msra.mxu0 %v646
    %664 = vmatprep.subr.bf16.mxu0 0
    %665 = vmatpush1.bf16.msra.mxu0 %v647
    %666 = vmatprep.subr.bf16.mxu0 0
    %667 = vmatpush1.bf16.msra.mxu0 %v648
    %668 = vmatprep.subr.bf16.mxu0 0
    %669 = vmatpush1.bf16.msra.mxu0 %v649
    %670 = vmatprep.subr.bf16.mxu0 0
    %671 = vmatpush1.bf16.msra.mxu0 %v650
    %672 = vmatprep.subr.bf16.mxu0 0
    %673 = vmatpush1.bf16.msra.mxu0 %v651
    %674 = vmatprep.subr.bf16.mxu0 0
    %675 = vmatpush1.bf16.msra.mxu0 %v652
    %676 = vmatprep.subr.bf16.mxu0 0
    %677 = vmatpush1.bf16.msra.mxu0 %v653
    %678 = vmatprep.subr.bf16.mxu0 0
    %679 = vmatpush1.bf16.msra.mxu0 0
    %680 = vmatprep.subr.bf16.mxu0 0
    %681 = vmatpush1.bf16.msra.mxu0 0
    %682 = vmatprep.subr.bf16.mxu0 0
    %683 = vmatpush1.bf16.msra.mxu0 0
    %684 = vmatprep.subr.bf16.mxu0 0
    %685 = vmatpush1.bf16.msra.mxu0 0
    %686 = vmatprep.subr.bf16.mxu0 0
    %687 = vmatpush1.bf16.msra.mxu0 0
    %688 = vmatprep.subr.bf16.mxu0 0
    %689 = vmatpush1.bf16.msra.mxu0 0
    %690 = vmatprep.subr.bf16.mxu0 0
    %691 = vmatpush1.bf16.msra.mxu0 0
    %692 = vmatprep.subr.bf16.mxu0 0
    %693 = vmatpush1.bf16.msra.mxu0 0
    %694 = vmatprep.mubr.bf16.mxu0 0
    %695 = vmatmul.mubr.bf16.gmra.mrb[0].mxu0 %v612
    %v696 = vpop.f32.mrb[0].mxu0
    %v697 = vadd.f32 %v606, %v696
    %v698 = vpop.f32.mrb[0].mxu0
    %v699 = vpop.f32.mrb[0].mxu0
    %v700 = vadd.f32 %v606, %v699
    %v701 = vpop.f32.mrb[0].mxu0
    %702 = vdwg.mxu0
    %v703 = vmax.f32 %v697, 0.0
    %v704 = vmax.f32 %v700, 0.0
    %v705 = vpack.c.bf16 %v704, %v703
    %v706 = vld [vmem:[#allocation2 + $0x380] sm:$0xf]
    %v707 = vld [vmem:[#allocation2 + $0x388] sm:$0xf]
    %v708 = vld [vmem:[#allocation2 + $0x390] sm:$0xf]
    %v709 = vld [vmem:[#allocation2 + $0x398] sm:$0xf]
    %v710 = vld [vmem:[#allocation2 + $0x3a0] sm:$0xf]
    %v711 = vld [vmem:[#allocation2 + $0x3a8] sm:$0xf]
    %v712 = vld [vmem:[#allocation2 + $0x3b0] sm:$0xf]
    %v713 = vld [vmem:[#allocation2 + $0x3b8] sm:$0xf]
    %v714 = vld [vmem:[#allocation2 + $0x3c0] sm:$0xf]
    %v715 = vld [vmem:[#allocation2 + $0x3c8] sm:$0xf]
    %v716 = vld [vmem:[#allocation2 + $0x3d0] sm:$0xf]
    %v717 = vld [vmem:[#allocation2 + $0x3d8] sm:$0xf]
    %v718 = vld [vmem:[#allocation2 + $0x3e0] sm:$0xf]
    %v719 = vld [vmem:[#allocation2 + $0x3e8] sm:$0xf]
    %v720 = vld [vmem:[#allocation2 + $0x3f0] sm:$0xf]
    %v721 = vld [vmem:[#allocation2 + $0x3f8] sm:$0xf]
    %v722 = vld [vmem:[%s2 + $0x2] sm:$0x1]
    %v724 = vlaneseq
    %v725 = vshrl.u32 %v724, 7
    %v726 = vsub.s32 0, %v725
    %v727 = vrot.slane %v722, %v726
    %v745 = vunpack.c.l.b16 %v706
    %v746 = vunpack.c.l.b16 %v707
    %v747 = vunpack.c.l.b16 %v708
    %v748 = vunpack.c.l.b16 %v709
    %v749 = vunpack.c.l.b16 %v710
    %v750 = vunpack.c.l.b16 %v711
    %v751 = vunpack.c.l.b16 %v712
    %v752 = vunpack.c.l.b16 %v713
    %v753 = vunpack.c.l.b16 %v714
    %v754 = vunpack.c.l.b16 %v715
    %v755 = vunpack.c.l.b16 %v716
    %v756 = vunpack.c.l.b16 %v717
    %v757 = vunpack.c.l.b16 %v718
    %v758 = vunpack.c.l.b16 %v719
    %v759 = vunpack.c.l.b16 %v720
    %v760 = vunpack.c.l.b16 %v721
    %v761 = vpack.c.b16 %v746, %v745
    %v762 = vpack.c.b16 %v748, %v747
    %v763 = vpack.c.b16 %v750, %v749
    %v764 = vpack.c.b16 %v752, %v751
    %v765 = vpack.c.b16 %v754, %v753
    %v766 = vpack.c.b16 %v756, %v755
    %v767 = vpack.c.b16 %v758, %v757
    %v768 = vpack.c.b16 %v760, %v759
    %777 = vmatprep.subr.bf16.mxu0 0
    %778 = vmatpush1.bf16.msra.mxu0 %v761
    %779 = vmatprep.subr.bf16.mxu0 0
    %780 = vmatpush1.bf16.msra.mxu0 %v762
    %781 = vmatprep.subr.bf16.mxu0 0
    %782 = vmatpush1.bf16.msra.mxu0 %v763
    %783 = vmatprep.subr.bf16.mxu0 0
    %784 = vmatpush1.bf16.msra.mxu0 %v764
    %785 = vmatprep.subr.bf16.mxu0 0
    %786 = vmatpush1.bf16.msra.mxu0 %v765
    %787 = vmatprep.subr.bf16.mxu0 0
    %788 = vmatpush1.bf16.msra.mxu0 %v766
    %789 = vmatprep.subr.bf16.mxu0 0
    %790 = vmatpush1.bf16.msra.mxu0 %v767
    %791 = vmatprep.subr.bf16.mxu0 0
    %792 = vmatpush1.bf16.msra.mxu0 %v768
    %793 = vmatprep.subr.bf16.mxu0 0
    %794 = vmatpush1.bf16.msra.mxu0 0
    %795 = vmatprep.subr.bf16.mxu0 0
    %796 = vmatpush1.bf16.msra.mxu0 0
    %797 = vmatprep.subr.bf16.mxu0 0
    %798 = vmatpush1.bf16.msra.mxu0 0
    %799 = vmatprep.subr.bf16.mxu0 0
    %800 = vmatpush1.bf16.msra.mxu0 0
    %801 = vmatprep.subr.bf16.mxu0 0
    %802 = vmatpush1.bf16.msra.mxu0 0
    %803 = vmatprep.subr.bf16.mxu0 0
    %804 = vmatpush1.bf16.msra.mxu0 0
    %805 = vmatprep.subr.bf16.mxu0 0
    %806 = vmatpush1.bf16.msra.mxu0 0
    %807 = vmatprep.subr.bf16.mxu0 0
    %808 = vmatpush1.bf16.msra.mxu0 0
    %809 = vmatprep.mubr.bf16.mxu0 0
    %810 = vmatmul.mubr.bf16.gmra.mrb[0].mxu0 %v705
    %v811 = vpop.f32.mrb[0].mxu0
    %v812 = vadd.f32 %v727, %v811
    %v813 = vpop.f32.mrb[0].mxu0
    %v814 = vpop.f32.mrb[0].mxu0
    %v815 = vadd.f32 %v727, %v814
    %v816 = vpop.f32.mrb[0].mxu0
    %817 = vdwg.mxu0
    %v818 = vpack.c.bf16 %v815, %v812
    %v819 = vld [vmem:[#allocation2 + $0x400] sm:$0xff]
    %v820 = vld [vmem:[#allocation2 + $0x408] sm:$0xff]
    %v821 = vld [vmem:[#allocation2 + $0x410] sm:$0xff]
    %v822 = vld [vmem:[#allocation2 + $0x418] sm:$0xff]
    %v823 = vld [vmem:[#allocation2 + $0x420] sm:$0xff]
    %v824 = vld [vmem:[#allocation2 + $0x428] sm:$0xff]
    %v825 = vld [vmem:[#allocation2 + $0x430] sm:$0xff]
    %v826 = vld [vmem:[#allocation2 + $0x438] sm:$0xff]
    %v827 = vld [vmem:[#allocation2 + $0x440] sm:$0xff]
    %v828 = vld [vmem:[#allocation2 + $0x448] sm:$0xff]
    %v829 = vld [vmem:[#allocation2 + $0x450] sm:$0xff]
    %v830 = vld [vmem:[#allocation2 + $0x458] sm:$0xff]
    %v831 = vld [vmem:[#allocation2 + $0x460] sm:$0xff]
    %v832 = vld [vmem:[#allocation2 + $0x468] sm:$0xff]
    %v833 = vld [vmem:[#allocation2 + $0x470] sm:$0xff]
    %v834 = vld [vmem:[#allocation2 + $0x478] sm:$0xff]
    %v835 = vpack.c.bf16 %v582, %v579
    %v836 = vld [vmem:[#allocation2 + $0x480] sm:$0xff]
    %v837 = vld [vmem:[#allocation2 + $0x488] sm:$0xff]
    %v838 = vld [vmem:[#allocation2 + $0x490] sm:$0xff]
    %v839 = vld [vmem:[#allocation2 + $0x498] sm:$0xff]
    %v840 = vld [vmem:[#allocation2 + $0x4a0] sm:$0xff]
    %v841 = vld [vmem:[#allocation2 + $0x4a8] sm:$0xff]
    %v842 = vld [vmem:[#allocation2 + $0x4b0] sm:$0xff]
    %v843 = vld [vmem:[#allocation2 + $0x4b8] sm:$0xff]
    %v844 = vld [vmem:[#allocation2 + $0x4c0] sm:$0xff]
    %v845 = vld [vmem:[#allocation2 + $0x4c8] sm:$0xff]
    %v846 = vld [vmem:[#allocation2 + $0x4d0] sm:$0xff]
    %v847 = vld [vmem:[#allocation2 + $0x4d8] sm:$0xff]
    %v848 = vld [vmem:[#allocation2 + $0x4e0] sm:$0xff]
    %v849 = vld [vmem:[#allocation2 + $0x4e8] sm:$0xff]
    %v850 = vld [vmem:[#allocation2 + $0x4f0] sm:$0xff]
    %v851 = vld [vmem:[#allocation2 + $0x4f8] sm:$0xff]
    %v868 = vunpack.c.l.b16 %v836
    %v869 = vunpack.c.h.b16 %v836
    %v870 = vunpack.c.l.b16 %v837
    %v871 = vunpack.c.h.b16 %v837
    %v872 = vunpack.c.l.b16 %v838
    %v873 = vunpack.c.h.b16 %v838
    %v874 = vunpack.c.l.b16 %v839
    %v875 = vunpack.c.h.b16 %v839
    %v876 = vunpack.c.l.b16 %v840
    %v877 = vunpack.c.h.b16 %v840
    %v878 = vunpack.c.l.b16 %v841
    %v879 = vunpack.c.h.b16 %v841
    %v880 = vunpack.c.l.b16 %v842
    %v881 = vunpack.c.h.b16 %v842
    %v882 = vunpack.c.l.b16 %v843
    %v883 = vunpack.c.h.b16 %v843
    %v884 = vunpack.c.l.b16 %v844
    %v885 = vunpack.c.h.b16 %v844
    %v886 = vunpack.c.l.b16 %v845
    %v887 = vunpack.c.h.b16 %v845
    %v888 = vunpack.c.l.b16 %v846
    %v889 = vunpack.c.h.b16 %v846
    %v890 = vunpack.c.l.b16 %v847
    %v891 = vunpack.c.h.b16 %v847
    %v892 = vunpack.c.l.b16 %v848
    %v893 = vunpack.c.h.b16 %v848
    %v894 = vunpack.c.l.b16 %v849
    %v895 = vunpack.c.h.b16 %v849
    %v896 = vunpack.c.l.b16 %v850
    %v897 = vunpack.c.h.b16 %v850
    %v898 = vunpack.c.l.b16 %v851
    %v899 = vunpack.c.h.b16 %v851
    %v900 = vpack.c.b16 %v870, %v868
    %v901 = vpack.c.b16 %v871, %v869
    %v902 = vpack.c.b16 %v874, %v872
    %v903 = vpack.c.b16 %v875, %v873
    %v904 = vpack.c.b16 %v878, %v876
    %v905 = vpack.c.b16 %v879, %v877
    %v906 = vpack.c.b16 %v882, %v880
    %v907 = vpack.c.b16 %v883, %v881
    %v908 = vpack.c.b16 %v886, %v884
    %v909 = vpack.c.b16 %v887, %v885
    %v910 = vpack.c.b16 %v890, %v888
    %v911 = vpack.c.b16 %v891, %v889
    %v912 = vpack.c.b16 %v894, %v892
    %v913 = vpack.c.b16 %v895, %v893
    %v914 = vpack.c.b16 %v898, %v896
    %v915 = vpack.c.b16 %v899, %v897
    %932 = vmatprep.subr.bf16.mxu0 %v901
    %933 = vmatpush1.bf16.msra.mxu0 %v900
    %934 = vmatprep.subr.bf16.mxu0 %v903
    %935 = vmatpush1.bf16.msra.mxu0 %v902
    %936 = vmatprep.subr.bf16.mxu0 %v905
    %937 = vmatpush1.bf16.msra.mxu0 %v904
    %938 = vmatprep.subr.bf16.mxu0 %v907
    %939 = vmatpush1.bf16.msra.mxu0 %v906
    %940 = vmatprep.subr.bf16.mxu0 %v909
    %941 = vmatpush1.bf16.msra.mxu0 %v908
    %942 = vmatprep.subr.bf16.mxu0 %v911
    %943 = vmatpush1.bf16.msra.mxu0 %v910
    %944 = vmatprep.subr.bf16.mxu0 %v913
    %945 = vmatpush1.bf16.msra.mxu0 %v912
    %946 = vmatprep.subr.bf16.mxu0 %v915
    %947 = vmatpush1.bf16.msra.mxu0 %v914
    %948 = vmatprep.subr.bf16.mxu0 0
    %949 = vmatpush1.bf16.msra.mxu0 0
    %950 = vmatprep.subr.bf16.mxu0 0
    %951 = vmatpush1.bf16.msra.mxu0 0
    %952 = vmatprep.subr.bf16.mxu0 0
    %953 = vmatpush1.bf16.msra.mxu0 0
    %954 = vmatprep.subr.bf16.mxu0 0
    %955 = vmatpush1.bf16.msra.mxu0 0
    %956 = vmatprep.subr.bf16.mxu0 0
    %957 = vmatpush1.bf16.msra.mxu0 0
    %958 = vmatprep.subr.bf16.mxu0 0
    %959 = vmatpush1.bf16.msra.mxu0 0
    %960 = vmatprep.subr.bf16.mxu0 0
    %961 = vmatpush1.bf16.msra.mxu0 0
    %962 = vmatprep.subr.bf16.mxu0 0
    %963 = vmatpush1.bf16.msra.mxu0 0
    %964 = vmatprep.mubr.bf16.mxu0 0
    %965 = vmatmul.mubr.bf16.gmra.mrb[0].mxu0 %v835
    %v966 = vpop.f32.mrb[0].mxu0
    %v967 = vadd.f32 0.0, %v966
    %v968 = vpop.f32.mrb[0].mxu0
    %v969 = vadd.f32 0.0, %v968
    %v970 = vpop.f32.mrb[0].mxu0
    %v971 = vadd.f32 0.0, %v970
    %v972 = vpop.f32.mrb[0].mxu0
    %v973 = vadd.f32 0.0, %v972
    %974 = vdwg.mxu0
    %v991 = vunpack.c.l.b16 %v819
    %v992 = vunpack.c.h.b16 %v819
    %v993 = vunpack.c.l.b16 %v820
    %v994 = vunpack.c.h.b16 %v820
    %v995 = vunpack.c.l.b16 %v821
    %v996 = vunpack.c.h.b16 %v821
    %v997 = vunpack.c.l.b16 %v822
    %v998 = vunpack.c.h.b16 %v822
    %v999 = vunpack.c.l.b16 %v823
    %v1000 = vunpack.c.h.b16 %v823
    %v1001 = vunpack.c.l.b16 %v824
    %v1002 = vunpack.c.h.b16 %v824
    %v1003 = vunpack.c.l.b16 %v825
    %v1004 = vunpack.c.h.b16 %v825
    %v1005 = vunpack.c.l.b16 %v826
    %v1006 = vunpack.c.h.b16 %v826
    %v1007 = vunpack.c.l.b16 %v827
    %v1008 = vunpack.c.h.b16 %v827
    %v1009 = vunpack.c.l.b16 %v828
    %v1010 = vunpack.c.h.b16 %v828
    %v1011 = vunpack.c.l.b16 %v829
    %v1012 = vunpack.c.h.b16 %v829
    %v1013 = vunpack.c.l.b16 %v830
    %v1014 = vunpack.c.h.b16 %v830
    %v1015 = vunpack.c.l.b16 %v831
    %v1016 = vunpack.c.h.b16 %v831
    %v1017 = vunpack.c.l.b16 %v832
    %v1018 = vunpack.c.h.b16 %v832
    %v1019 = vunpack.c.l.b16 %v833
    %v1020 = vunpack.c.h.b16 %v833
    %v1021 = vunpack.c.l.b16 %v834
    %v1022 = vunpack.c.h.b16 %v834
    %v1023 = vpack.c.b16 %v993, %v991
    %v1024 = vpack.c.b16 %v994, %v992
    %v1025 = vpack.c.b16 %v997, %v995
    %v1026 = vpack.c.b16 %v998, %v996
    %v1027 = vpack.c.b16 %v1001, %v999
    %v1028 = vpack.c.b16 %v1002, %v1000
    %v1029 = vpack.c.b16 %v1005, %v1003
    %v1030 = vpack.c.b16 %v1006, %v1004
    %v1031 = vpack.c.b16 %v1009, %v1007
    %v1032 = vpack.c.b16 %v1010, %v1008
    %v1033 = vpack.c.b16 %v1013, %v1011
    %v1034 = vpack.c.b16 %v1014, %v1012
    %v1035 = vpack.c.b16 %v1017, %v1015
    %v1036 = vpack.c.b16 %v1018, %v1016
    %v1037 = vpack.c.b16 %v1021, %v1019
    %v1038 = vpack.c.b16 %v1022, %v1020
    %1055 = vmatprep.subr.bf16.mxu0 %v1024
    %1056 = vmatpush1.bf16.msra.mxu0 %v1023
    %1057 = vmatprep.subr.bf16.mxu0 %v1026
    %1058 = vmatpush1.bf16.msra.mxu0 %v1025
    %1059 = vmatprep.subr.bf16.mxu0 %v1028
    %1060 = vmatpush1.bf16.msra.mxu0 %v1027
    %1061 = vmatprep.subr.bf16.mxu0 %v1030
    %1062 = vmatpush1.bf16.msra.mxu0 %v1029
    %1063 = vmatprep.subr.bf16.mxu0 %v1032
    %1064 = vmatpush1.bf16.msra.mxu0 %v1031
    %1065 = vmatprep.subr.bf16.mxu0 %v1034
    %1066 = vmatpush1.bf16.msra.mxu0 %v1033
    %1067 = vmatprep.subr.bf16.mxu0 %v1036
    %1068 = vmatpush1.bf16.msra.mxu0 %v1035
    %1069 = vmatprep.subr.bf16.mxu0 %v1038
    %1070 = vmatpush1.bf16.msra.mxu0 %v1037
    %1071 = vmatprep.subr.bf16.mxu0 0
    %1072 = vmatpush1.bf16.msra.mxu0 0
    %1073 = vmatprep.subr.bf16.mxu0 0
    %1074 = vmatpush1.bf16.msra.mxu0 0
    %1075 = vmatprep.subr.bf16.mxu0 0
    %1076 = vmatpush1.bf16.msra.mxu0 0
    %1077 = vmatprep.subr.bf16.mxu0 0
    %1078 = vmatpush1.bf16.msra.mxu0 0
    %1079 = vmatprep.subr.bf16.mxu0 0
    %1080 = vmatpush1.bf16.msra.mxu0 0
    %1081 = vmatprep.subr.bf16.mxu0 0
    %1082 = vmatpush1.bf16.msra.mxu0 0
    %1083 = vmatprep.subr.bf16.mxu0 0
    %1084 = vmatpush1.bf16.msra.mxu0 0
    %1085 = vmatprep.subr.bf16.mxu0 0
    %1086 = vmatpush1.bf16.msra.mxu0 0
    %1087 = vmatprep.mubr.bf16.mxu0 0
    %1088 = vmatmul.mubr.bf16.gmra.mrb[0].mxu0 %v818
    %v1089 = vpop.f32.mrb[0].mxu0
    %v1090 = vadd.f32 %v967, %v1089
    %v1091 = vpop.f32.mrb[0].mxu0
    %v1092 = vadd.f32 %v969, %v1091
    %v1093 = vpop.f32.mrb[0].mxu0
    %v1094 = vadd.f32 %v971, %v1093
    %v1095 = vpop.f32.mrb[0].mxu0
    %v1096 = vadd.f32 %v973, %v1095
    %1097 = vdwg.mxu0
    %v1098 = vld [vmem:[%s2 + $0x3] sm:$0x3]
    %v1100 = vlaneseq
    %v1101 = vshrl.u32 %v1100, 7
    %v1102 = vsub.s32 0, %v1101
    %v1103 = vrot.slane %v1098, %v1102
    %v1104 = vlaneseq
    %v1105 = vshrl.u32 %v1104, 7
    %v1106 = vsub.s32 1, %v1105
    %v1107 = vrot.slane %v1098, %v1106
    %v1110 = vadd.f32 %v1090, %v1103
    %v1111 = vadd.f32 %v1092, %v1107
    %v1112 = vadd.f32 %v1094, %v1103
    %v1113 = vadd.f32 %v1096, %v1107
    %v1114 = vmul.f32 %v1111, 0.5
    %v1115 = vmul.f32 %v1113, 0.5
    %v1116 = vmul.f32 %v1114, 1.442695
    %v1117 = vpow.pop %v1116
    %v1118 = vmul.f32 %v1115, 1.442695
    %v1119 = vpow.pop %v1118
    %v1120 = vmul.f32 %v1117, %v39
    %v1121 = vmul.f32 %v1119, %v40
    %v1122 = vadd.f32 %v1110, %v1120
    %v1123 = vadd.f32 %v1112, %v1121
    %v1124 = vpack.c.bf16 %v1123, %v1122
    %v1125 = vld [vmem:[#allocation2 + $0x500] sm:$0xf]
    %v1126 = vld [vmem:[#allocation2 + $0x508] sm:$0xf]
    %v1127 = vld [vmem:[#allocation2 + $0x510] sm:$0xf]
    %v1128 = vld [vmem:[#allocation2 + $0x518] sm:$0xf]
    %v1129 = vld [vmem:[#allocation2 + $0x520] sm:$0xf]
    %v1130 = vld [vmem:[#allocation2 + $0x528] sm:$0xf]
    %v1131 = vld [vmem:[#allocation2 + $0x530] sm:$0xf]
    %v1132 = vld [vmem:[#allocation2 + $0x538] sm:$0xf]
    %v1133 = vld [vmem:[#allocation2 + $0x540] sm:$0xf]
    %v1134 = vld [vmem:[#allocation2 + $0x548] sm:$0xf]
    %v1135 = vld [vmem:[#allocation2 + $0x550] sm:$0xf]
    %v1136 = vld [vmem:[#allocation2 + $0x558] sm:$0xf]
    %v1137 = vld [vmem:[#allocation2 + $0x560] sm:$0xf]
    %v1138 = vld [vmem:[#allocation2 + $0x568] sm:$0xf]
    %v1139 = vld [vmem:[#allocation2 + $0x570] sm:$0xf]
    %v1140 = vld [vmem:[#allocation2 + $0x578] sm:$0xf]
    %v1141 = vld [vmem:[#allocation2 + $0x580] sm:$0xf]
    %v1142 = vld [vmem:[#allocation2 + $0x588] sm:$0xf]
    %v1143 = vld [vmem:[#allocation2 + $0x590] sm:$0xf]
    %v1144 = vld [vmem:[#allocation2 + $0x598] sm:$0xf]
    %v1145 = vld [vmem:[#allocation2 + $0x5a0] sm:$0xf]
    %v1146 = vld [vmem:[#allocation2 + $0x5a8] sm:$0xf]
    %v1147 = vld [vmem:[#allocation2 + $0x5b0] sm:$0xf]
    %v1148 = vld [vmem:[#allocation2 + $0x5b8] sm:$0xf]
    %v1149 = vld [vmem:[#allocation2 + $0x5c0] sm:$0xf]
    %v1150 = vld [vmem:[#allocation2 + $0x5c8] sm:$0xf]
    %v1151 = vld [vmem:[#allocation2 + $0x5d0] sm:$0xf]
    %v1152 = vld [vmem:[#allocation2 + $0x5d8] sm:$0xf]
    %v1153 = vld [vmem:[#allocation2 + $0x5e0] sm:$0xf]
    %v1154 = vld [vmem:[#allocation2 + $0x5e8] sm:$0xf]
    %v1155 = vld [vmem:[#allocation2 + $0x5f0] sm:$0xf]
    %v1156 = vld [vmem:[#allocation2 + $0x5f8] sm:$0xf]
    %v1173 = vunpack.c.l.b16 %v1141
    %v1174 = vunpack.c.l.b16 %v1142
    %v1175 = vunpack.c.l.b16 %v1143
    %v1176 = vunpack.c.l.b16 %v1144
    %v1177 = vunpack.c.l.b16 %v1145
    %v1178 = vunpack.c.l.b16 %v1146
    %v1179 = vunpack.c.l.b16 %v1147
    %v1180 = vunpack.c.l.b16 %v1148
    %v1181 = vunpack.c.l.b16 %v1149
    %v1182 = vunpack.c.l.b16 %v1150
    %v1183 = vunpack.c.l.b16 %v1151
    %v1184 = vunpack.c.l.b16 %v1152
    %v1185 = vunpack.c.l.b16 %v1153
    %v1186 = vunpack.c.l.b16 %v1154
    %v1187 = vunpack.c.l.b16 %v1155
    %v1188 = vunpack.c.l.b16 %v1156
    %v1189 = vpack.c.b16 %v1174, %v1173
    %v1190 = vpack.c.b16 %v1176, %v1175
    %v1191 = vpack.c.b16 %v1178, %v1177
    %v1192 = vpack.c.b16 %v1180, %v1179
    %v1193 = vpack.c.b16 %v1182, %v1181
    %v1194 = vpack.c.b16 %v1184, %v1183
    %v1195 = vpack.c.b16 %v1186, %v1185
    %v1196 = vpack.c.b16 %v1188, %v1187
    %1205 = vmatprep.subr.bf16.mxu0 0
    %1206 = vmatpush1.bf16.msra.mxu0 %v1189
    %1207 = vmatprep.subr.bf16.mxu0 0
    %1208 = vmatpush1.bf16.msra.mxu0 %v1190
    %1209 = vmatprep.subr.bf16.mxu0 0
    %1210 = vmatpush1.bf16.msra.mxu0 %v1191
    %1211 = vmatprep.subr.bf16.mxu0 0
    %1212 = vmatpush1.bf16.msra.mxu0 %v1192
    %1213 = vmatprep.subr.bf16.mxu0 0
    %1214 = vmatpush1.bf16.msra.mxu0 %v1193
    %1215 = vmatprep.subr.bf16.mxu0 0
    %1216 = vmatpush1.bf16.msra.mxu0 %v1194
    %1217 = vmatprep.subr.bf16.mxu0 0
    %1218 = vmatpush1.bf16.msra.mxu0 %v1195
    %1219 = vmatprep.subr.bf16.mxu0 0
    %1220 = vmatpush1.bf16.msra.mxu0 %v1196
    %1221 = vmatprep.subr.bf16.mxu0 0
    %1222 = vmatpush1.bf16.msra.mxu0 0
    %1223 = vmatprep.subr.bf16.mxu0 0
    %1224 = vmatpush1.bf16.msra.mxu0 0
    %1225 = vmatprep.subr.bf16.mxu0 0
    %1226 = vmatpush1.bf16.msra.mxu0 0
    %1227 = vmatprep.subr.bf16.mxu0 0
    %1228 = vmatpush1.bf16.msra.mxu0 0
    %1229 = vmatprep.subr.bf16.mxu0 0
    %1230 = vmatpush1.bf16.msra.mxu0 0
    %1231 = vmatprep.subr.bf16.mxu0 0
    %1232 = vmatpush1.bf16.msra.mxu0 0
    %1233 = vmatprep.subr.bf16.mxu0 0
    %1234 = vmatpush1.bf16.msra.mxu0 0
    %1235 = vmatprep.subr.bf16.mxu0 0
    %1236 = vmatpush1.bf16.msra.mxu0 0
    %1237 = vmatprep.mubr.bf16.mxu0 0
    %1238 = vmatmul.mubr.bf16.gmra.mrb[0].mxu0 %v835
    %v1239 = vpop.f32.mrb[0].mxu0
    %v1240 = vadd.f32 0.0, %v1239
    %v1241 = vpop.f32.mrb[0].mxu0
    %v1242 = vpop.f32.mrb[0].mxu0
    %v1243 = vadd.f32 0.0, %v1242
    %v1244 = vpop.f32.mrb[0].mxu0
    %1245 = vdwg.mxu0
    %v1262 = vunpack.c.l.b16 %v1125
    %v1263 = vunpack.c.l.b16 %v1126
    %v1264 = vunpack.c.l.b16 %v1127
    %v1265 = vunpack.c.l.b16 %v1128
    %v1266 = vunpack.c.l.b16 %v1129
    %v1267 = vunpack.c.l.b16 %v1130
    %v1268 = vunpack.c.l.b16 %v1131
    %v1269 = vunpack.c.l.b16 %v1132
    %v1270 = vunpack.c.l.b16 %v1133
    %v1271 = vunpack.c.l.b16 %v1134
    %v1272 = vunpack.c.l.b16 %v1135
    %v1273 = vunpack.c.l.b16 %v1136
    %v1274 = vunpack.c.l.b16 %v1137
    %v1275 = vunpack.c.l.b16 %v1138
    %v1276 = vunpack.c.l.b16 %v1139
    %v1277 = vunpack.c.l.b16 %v1140
    %v1278 = vpack.c.b16 %v1263, %v1262
    %v1279 = vpack.c.b16 %v1265, %v1264
    %v1280 = vpack.c.b16 %v1267, %v1266
    %v1281 = vpack.c.b16 %v1269, %v1268
    %v1282 = vpack.c.b16 %v1271, %v1270
    %v1283 = vpack.c.b16 %v1273, %v1272
    %v1284 = vpack.c.b16 %v1275, %v1274
    %v1285 = vpack.c.b16 %v1277, %v1276
    %1294 = vmatprep.subr.bf16.mxu0 0
    %1295 = vmatpush1.bf16.msra.mxu0 %v1278
    %1296 = vmatprep.subr.bf16.mxu0 0
    %1297 = vmatpush1.bf16.msra.mxu0 %v1279
    %1298 = vmatprep.subr.bf16.mxu0 0
    %1299 = vmatpush1.bf16.msra.mxu0 %v1280
    %1300 = vmatprep.subr.bf16.mxu0 0
    %1301 = vmatpush1.bf16.msra.mxu0 %v1281
    %1302 = vmatprep.subr.bf16.mxu0 0
    %1303 = vmatpush1.bf16.msra.mxu0 %v1282
    %1304 = vmatprep.subr.bf16.mxu0 0
    %1305 = vmatpush1.bf16.msra.mxu0 %v1283
    %1306 = vmatprep.subr.bf16.mxu0 0
    %1307 = vmatpush1.bf16.msra.mxu0 %v1284
    %1308 = vmatprep.subr.bf16.mxu0 0
    %1309 = vmatpush1.bf16.msra.mxu0 %v1285
    %1310 = vmatprep.subr.bf16.mxu0 0
    %1311 = vmatpush1.bf16.msra.mxu0 0
    %1312 = vmatprep.subr.bf16.mxu0 0
    %1313 = vmatpush1.bf16.msra.mxu0 0
    %1314 = vmatprep.subr.bf16.mxu0 0
    %1315 = vmatpush1.bf16.msra.mxu0 0
    %1316 = vmatprep.subr.bf16.mxu0 0
    %1317 = vmatpush1.bf16.msra.mxu0 0
    %1318 = vmatprep.subr.bf16.mxu0 0
    %1319 = vmatpush1.bf16.msra.mxu0 0
    %1320 = vmatprep.subr.bf16.mxu0 0
    %1321 = vmatpush1.bf16.msra.mxu0 0
    %1322 = vmatprep.subr.bf16.mxu0 0
    %1323 = vmatpush1.bf16.msra.mxu0 0
    %1324 = vmatprep.subr.bf16.mxu0 0
    %1325 = vmatpush1.bf16.msra.mxu0 0
    %1326 = vmatprep.mubr.bf16.mxu0 0
    %1327 = vmatmul.mubr.bf16.gmra.mrb[0].mxu0 %v1124
    %v1328 = vpop.f32.mrb[0].mxu0
    %v1329 = vadd.f32 %v1240, %v1328
    %v1330 = vpop.f32.mrb[0].mxu0
    %v1331 = vpop.f32.mrb[0].mxu0
    %v1332 = vadd.f32 %v1243, %v1331
    %v1333 = vpop.f32.mrb[0].mxu0
    %1334 = vdwg.mxu0
    %v1335 = vld [vmem:[%s2 + $0x5] sm:$0x1]
    %v1337 = vlaneseq
    %v1338 = vshrl.u32 %v1337, 7
    %v1339 = vsub.s32 0, %v1338
    %v1340 = vrot.slane %v1335, %v1339
    %v1342 = vadd.f32 %v1329, %v1340
    %v1343 = vadd.f32 %v1332, %v1340
    %v1344 = vmax.f32 %v1342, 0.0
    %v1345 = vmax.f32 %v1343, 0.0
    %v1346 = vpack.c.bf16 %v1345, %v1344
    %v1347 = vld [vmem:[#allocation2 + $0x600] sm:$0xf]
    %v1348 = vld [vmem:[#allocation2 + $0x608] sm:$0xf]
    %v1349 = vld [vmem:[#allocation2 + $0x610] sm:$0xf]
    %v1350 = vld [vmem:[#allocation2 + $0x618] sm:$0xf]
    %v1351 = vld [vmem:[#allocation2 + $0x620] sm:$0xf]
    %v1352 = vld [vmem:[#allocation2 + $0x628] sm:$0xf]
    %v1353 = vld [vmem:[#allocation2 + $0x630] sm:$0xf]
    %v1354 = vld [vmem:[#allocation2 + $0x638] sm:$0xf]
    %v1355 = vld [vmem:[#allocation2 + $0x640] sm:$0xf]
    %v1356 = vld [vmem:[#allocation2 + $0x648] sm:$0xf]
    %v1357 = vld [vmem:[#allocation2 + $0x650] sm:$0xf]
    %v1358 = vld [vmem:[#allocation2 + $0x658] sm:$0xf]
    %v1359 = vld [vmem:[#allocation2 + $0x660] sm:$0xf]
    %v1360 = vld [vmem:[#allocation2 + $0x668] sm:$0xf]
    %v1361 = vld [vmem:[#allocation2 + $0x670] sm:$0xf]
    %v1362 = vld [vmem:[#allocation2 + $0x678] sm:$0xf]
    %v1363 = vld [vmem:[%s2 + $0x6] sm:$0x1]
    %v1365 = vlaneseq
    %v1366 = vshrl.u32 %v1365, 7
    %v1367 = vsub.s32 0, %v1366
    %v1368 = vrot.slane %v1363, %v1367
    %v1386 = vunpack.c.l.b16 %v1347
    %v1387 = vunpack.c.l.b16 %v1348
    %v1388 = vunpack.c.l.b16 %v1349
    %v1389 = vunpack.c.l.b16 %v1350
    %v1390 = vunpack.c.l.b16 %v1351
    %v1391 = vunpack.c.l.b16 %v1352
    %v1392 = vunpack.c.l.b16 %v1353
    %v1393 = vunpack.c.l.b16 %v1354
    %v1394 = vunpack.c.l.b16 %v1355
    %v1395 = vunpack.c.l.b16 %v1356
    %v1396 = vunpack.c.l.b16 %v1357
    %v1397 = vunpack.c.l.b16 %v1358
    %v1398 = vunpack.c.l.b16 %v1359
    %v1399 = vunpack.c.l.b16 %v1360
    %v1400 = vunpack.c.l.b16 %v1361
    %v1401 = vunpack.c.l.b16 %v1362
    %v1402 = vpack.c.b16 %v1387, %v1386
    %v1403 = vpack.c.b16 %v1389, %v1388
    %v1404 = vpack.c.b16 %v1391, %v1390
    %v1405 = vpack.c.b16 %v1393, %v1392
    %v1406 = vpack.c.b16 %v1395, %v1394
    %v1407 = vpack.c.b16 %v1397, %v1396
    %v1408 = vpack.c.b16 %v1399, %v1398
    %v1409 = vpack.c.b16 %v1401, %v1400
    %1418 = vmatprep.subr.bf16.mxu0 0
    %1419 = vmatpush1.bf16.msra.mxu0 %v1402
    %1420 = vmatprep.subr.bf16.mxu0 0
    %1421 = vmatpush1.bf16.msra.mxu0 %v1403
    %1422 = vmatprep.subr.bf16.mxu0 0
    %1423 = vmatpush1.bf16.msra.mxu0 %v1404
    %1424 = vmatprep.subr.bf16.mxu0 0
    %1425 = vmatpush1.bf16.msra.mxu0 %v1405
    %1426 = vmatprep.subr.bf16.mxu0 0
    %1427 = vmatpush1.bf16.msra.mxu0 %v1406
    %1428 = vmatprep.subr.bf16.mxu0 0
    %1429 = vmatpush1.bf16.msra.mxu0 %v1407
    %1430 = vmatprep.subr.bf16.mxu0 0
    %1431 = vmatpush1.bf16.msra.mxu0 %v1408
    %1432 = vmatprep.subr.bf16.mxu0 0
    %1433 = vmatpush1.bf16.msra.mxu0 %v1409
    %1434 = vmatprep.subr.bf16.mxu0 0
    %1435 = vmatpush1.bf16.msra.mxu0 0
    %1436 = vmatprep.subr.bf16.mxu0 0
    %1437 = vmatpush1.bf16.msra.mxu0 0
    %1438 = vmatprep.subr.bf16.mxu0 0
    %1439 = vmatpush1.bf16.msra.mxu0 0
    %1440 = vmatprep.subr.bf16.mxu0 0
    %1441 = vmatpush1.bf16.msra.mxu0 0
    %1442 = vmatprep.subr.bf16.mxu0 0
    %1443 = vmatpush1.bf16.msra.mxu0 0
    %1444 = vmatprep.subr.bf16.mxu0 0
    %1445 = vmatpush1.bf16.msra.mxu0 0
    %1446 = vmatprep.subr.bf16.mxu0 0
    %1447 = vmatpush1.bf16.msra.mxu0 0
    %1448 = vmatprep.subr.bf16.mxu0 0
    %1449 = vmatpush1.bf16.msra.mxu0 0
    %1450 = vmatprep.mubr.bf16.mxu0 0
    %1451 = vmatmul.mubr.bf16.gmra.mrb[0].mxu0 %v1346
    %v1452 = vpop.f32.mrb[0].mxu0
    %v1453 = vadd.f32 %v1368, %v1452
    %v1454 = vpop.f32.mrb[0].mxu0
    %v1455 = vpop.f32.mrb[0].mxu0
    %v1456 = vadd.f32 %v1368, %v1455
    %v1457 = vpop.f32.mrb[0].mxu0
    %1458 = vdwg.mxu0
    %v1459 = vxor.u32 %v1453, 2147483648
    %v1460 = vxor.u32 %v1456, 2147483648
    %v1461 = vmul.f32 %v1459, 1.442695
    %v1462 = vpow.pop %v1461
    %v1463 = vmul.f32 %v1460, 1.442695
    %v1464 = vpow.pop %v1463
    %v1465 = vadd.f32 %v1462, 1.0
    %v1466 = vadd.f32 %v1464, 1.0
    %v1467 = vrcp.pop %v1465
    %v1468 = vmul.f32 1.0, %v1467
    %v1469 = vrcp.pop %v1466
    %v1470 = vmul.f32 1.0, %v1469
    %1471 = vst [vmem:[%s3] sm:$0xff] %v1468
    %1472 = vst [vmem:[%s3 + $0x18] sm:$0xff] %v1470
    %1473 = vst [vmem:[%s3 + $0x8] sm:$0xff] %v1110
    %1474 = vst [vmem:[%s3 + $0x20] sm:$0xff] %v1112
    %1475 = vst [vmem:[%s3 + $0x10] sm:$0xff] %v1111
    %1476 = vst [vmem:[%s3 + $0x28] sm:$0xff] %v1113
    // Predicated region
    $region18: #{textcvae_forward.1} parent=1 // pred_check
      _
    $region19: #{textcvae_forward.1} parent=1 // pred_check_branch
      %1478 = sbr.rel (0) target = $region21
    $region20: #{textcvae_forward.1} parent=1 // pred_region
      _
    $region21: #{textcvae_forward.1} parent=1 // pred_fallthru
      _
    // Predicated region
    $region22: #{textcvae_forward.1} parent=1 // pred_check
      _
    $region23: #{textcvae_forward.1} parent=1 // pred_check_branch
      %1480 = sbr.rel (0) target = $region25
    $region24: #{textcvae_forward.1} parent=1 // pred_region
      _
    $region25: #{textcvae_forward.1} parent=1 // pred_fallthru
      _
    %1481 = vsyncpa [#allocation3], 1

</llo_original>
